<compile_context>
chip_gen: v5e
topology: v5e:2x2
jax: 0.10.0
libtpu: 0.0.40
codegen_flags: <defaults>
</compile_context>

<pallas_src>
import functools
import math

import jax
import jax.numpy as jnp
import numpy as np
from jax.experimental import pallas as pl
from jax.experimental.pallas import tpu as pltpu

EPS = 1e-5


def _sigmoid(v):
    return 1.0 / (1.0 + jnp.exp(-v))


def _bn_relu(y, gamma, beta):
    """Training-mode BatchNorm (stats over the lane axis) folded into one scale/shift, + ReLU.
    Single pass: sum and sum-of-squares (halves XLU reduction traffic vs. centered form)."""
    inv_m = 1.0 / y.shape[1]
    mean = jnp.sum(y, axis=1, keepdims=True) * inv_m
    ex2 = jnp.sum(y * y, axis=1, keepdims=True) * inv_m
    var = jnp.maximum(ex2 - mean * mean, 0.0)
    scale = gamma * jax.lax.rsqrt(var + EPS)
    shift = beta - mean * scale
    return jnp.maximum(y * scale + shift, 0.0)


def _neighbor(x, offset, m):
    """out[:, i] = x[:, (i + offset) % m]  (circular; always paired with a validity mask)."""
    if offset == 0:
        return x
    return pltpu.roll(x, (-offset) % m, axis=1)


# ------------------------------------------------------------------- fused kernel body
def decoder_blockup_kernel(
        x_ref, w1_ref, g1_ref, b1_ref,                    # stage 1 (1x1 conv + BN + ReLU)
        um_ref,                                           # bilinear blend masks [6, M2]
        w2_ref, tv_ref, ga_ref, ba_ref, gb_ref, bb_ref,   # stage 2 (3x3 conv + 2x BN/ReLU)
        w3_ref, g3_ref, b3_ref,                           # stage 3 (1x1 conv + BN + ReLU)
        segmn_ref, segnm_ref, l1w_ref, l1b_ref, l2w_ref, l2b_ref, ws_ref, wsb_ref,  # SE
        o_ref, *, wu, m2, inv_hwu):
    f32 = jnp.float32

    # ---- stage 1: conv1 (1x1) + norm1 + relu1 on the nearest-expanded grid (exact) ----
    y1 = jnp.dot(w1_ref[...], x_ref[...], preferred_element_type=f32)        # [C1, M2]
    z1 = _bn_relu(y1, g1_ref[...], b1_ref[...])

    # ---- bilinear x2 upsample: two 0.75/0.25 neighbour blends (W then H) ----
    um = um_ref[...]
    nb_w = (um[0:1] * _neighbor(z1, -1, m2) + um[1:2] * _neighbor(z1, 1, m2)
            + um[2:3] * z1)
    zw = 0.75 * z1 + 0.25 * nb_w
    nb_h = (um[3:4] * _neighbor(zw, -wu, m2) + um[4:5] * _neighbor(zw, wu, m2)
            + um[5:6] * zw)
    x_up = 0.75 * zw + 0.25 * nb_h                                           # [C1, M2] f32

    # ---- stage 2: 3x3 SAME conv as 9 roll+mask taps, f32 accumulation ----
    tv = tv_ref[...]
    y2 = None
    for k in range(9):
        dh, dw = k // 3, k % 3
        off = (dh - 1) * wu + (dw - 1)
        tap = (_neighbor(x_up, off, m2) * tv[k:k + 1]).astype(jnp.bfloat16)
        contrib = jnp.dot(w2_ref[k], tap, preferred_element_type=f32)        # [C1, M2]
        y2 = contrib if y2 is None else y2 + contrib
    z2 = _bn_relu(y2, ga_ref[...], ba_ref[...])          # ConvUp.norm1 + relu
    z2 = _bn_relu(z2, gb_ref[...], bb_ref[...])          # norm2 + relu2

    # ---- stage 3: conv3 (1x1) + norm3 + relu3 ----
    y3 = jnp.dot(w3_ref[...], z2.astype(jnp.bfloat16), preferred_element_type=f32)
    z3 = _bn_relu(y3, g3_ref[...], b3_ref[...])                              # [Cf, M2] f32

    # ---- channel SE: per-image means via one matmul (stays in VMEM) ----
    cmean = jnp.dot(z3, segmn_ref[...], preferred_element_type=f32) * inv_hwu   # [Cf, N]
    t = jnp.maximum(jnp.dot(l1w_ref[...], cmean, preferred_element_type=f32)
                    + l1b_ref[...], 0.0)                                          # [Cf/2, N]
    g = _sigmoid(jnp.dot(l2w_ref[...], t, preferred_element_type=f32) + l2b_ref[...])  # [Cf, N]
    gate = jnp.dot(g, segnm_ref[...], preferred_element_type=f32)            # [Cf, M2]

    # ---- spatial SE: 1x1 conv to 1 channel (bf16 MXU operands, f32 accumulation) ----
    s = _sigmoid(jnp.dot(ws_ref[...], z3.astype(jnp.bfloat16),
                         preferred_element_type=f32) + wsb_ref[...])          # [1, M2]

    o_ref[...] = (z3 * (gate + s)).astype(o_ref.dtype)


# ------------------------------------------------------------------- pallas_call glue
def _full_spec(shape):
    nd = len(shape)
    return pl.BlockSpec(shape, lambda *_: (0,) * nd)


def decoder_blockup(x, p):
    """x: [N, Cin, H, W] f32 -> [N, n_filters, 2H, 2W] f32 (training-mode BN semantics)."""
    N, Cin, H, W = x.shape
    C1 = Cin // 4
    Cf = p["w3"].shape[0]
    Hu, Wu = 2 * H, 2 * W
    HWu = Hu * Wu
    M2 = N * HWu

    # ---- static (numpy) lane-index helpers: blend masks, tap validity, image segments ----
    lane = np.arange(M2)
    wo = lane % Wu
    ho = (lane // Wu) % Hu
    img = lane // HWu
    up_masks = np.stack([
        ((wo % 2 == 0) & (wo > 0)),          # W blend: left  neighbour (wo-1)
        ((wo % 2 == 1) & (wo < Wu - 1)),     # W blend: right neighbour (wo+1)
        ((wo == 0) | (wo == Wu - 1)),        # W blend: edge -> centre
        ((ho % 2 == 0) & (ho > 0)),          # H blend: up    neighbour (ho-1)
        ((ho % 2 == 1) & (ho < Hu - 1)),     # H blend: down  neighbour (ho+1)
        ((ho == 0) | (ho == Hu - 1)),        # H blend: edge -> centre
    ]).astype(np.float32)                                                   # [6, M2]
    tap_valid = np.stack([
        ((ho + dh - 1 >= 0) & (ho + dh - 1 < Hu) &
         (wo + dw - 1 >= 0) & (wo + dw - 1 < Wu))
        for dh in range(3) for dw in range(3)]).astype(np.float32)          # [9, M2]
    seg_mn = (img[:, None] == np.arange(N)[None, :]).astype(np.float32)     # [M2, N]
    seg_nm = np.ascontiguousarray(seg_mn.T)                                 # [N, M2]

    def col(v, c):
        return v.reshape(c, 1).astype(jnp.float32)

    # ---- layout glue: channels on sublanes, flattened (n, ho, wo) on the lane axis ----
    # nearest x2 expand of the input: 1x1 conv + training BN commute with it exactly.
    x_nn = jnp.repeat(jnp.repeat(x.transpose(1, 0, 2, 3), 2, axis=2), 2, axis=3)
    x_nn = x_nn.reshape(Cin, M2).astype(jnp.bfloat16)

    w1 = p["w1"].reshape(C1, Cin).astype(jnp.bfloat16)
    w2 = p["w2"].transpose(2, 3, 0, 1).reshape(9, C1, C1).astype(jnp.bfloat16)  # [(dh,dw),Co,Ci]
    w3 = p["w3"].reshape(Cf, C1).astype(jnp.bfloat16)

    args = [
        x_nn, w1, col(p["g1"], C1), col(p["be1"], C1),
        jnp.asarray(up_masks),
        w2, jnp.asarray(tap_valid),
        col(p["ga"], C1), col(p["ba"], C1), col(p["gb"], C1), col(p["bb"], C1),
        w3, col(p["g3"], Cf), col(p["be3"], Cf),
        jnp.asarray(seg_mn), jnp.asarray(seg_nm),
        p["l1w"].astype(jnp.float32), col(p["l1b"], Cf // 2),
        p["l2w"].astype(jnp.float32), col(p["l2b"], Cf),
        p["ws"].reshape(1, Cf).astype(jnp.bfloat16),
        p["wsb"].reshape(1, 1).astype(jnp.float32),
    ]

    kernel = functools.partial(decoder_blockup_kernel, wu=Wu, m2=M2, inv_hwu=1.0 / HWu)
    out_flat = pl.pallas_call(
        kernel,
        out_shape=jax.ShapeDtypeStruct((Cf, M2), jnp.float32),
        grid=(1,),
        in_specs=[_full_spec(a.shape) for a in args],
        out_specs=_full_spec((Cf, M2)),
        compiler_params=pltpu.CompilerParams(dimension_semantics=("arbitrary",)),
    )(*args)

    return out_flat.reshape(Cf, N, Hu, Wu).transpose(1, 0, 2, 3)


# ------------------------------------------------------------------- pure-JAX reference
def _upsample_matrix(n_in):
    """Row-interp matrix of nn.Upsample(scale_factor=2, mode='bilinear', align_corners=False)."""
    n_out = 2 * n_in
    u = np.zeros((n_out, n_in), np.float32)
    for o in range(n_out):
        src = max((o + 0.5) * 0.5 - 0.5, 0.0)
        i0 = min(int(np.floor(src)), n_in - 1)
        i1 = min(i0 + 1, n_in - 1)
        f = src - i0
        u[o, i0] += 1.0 - f
        u[o, i1] += f
    return u


def reference(x, p):
    """Mirror of the PyTorch forward (training-mode BN, bilinear align_corners=False upsample).
    Conv biases are kept (to verify that dropping them in the kernel is exact); bf16 casts
    mirror the Pallas path at the same matmul operands."""
    Cf = p["w3"].shape[0]
    H, W = x.shape[2], x.shape[3]
    hi = jax.lax.Precision.HIGHEST

    def bn(y, g, b):
        mu = y.mean(axis=(0, 2, 3), keepdims=True)
        var = jnp.square(y - mu).mean(axis=(0, 2, 3), keepdims=True)
        return ((y - mu) * jax.lax.rsqrt(var + EPS) * g.reshape(1, -1, 1, 1)
                + b.reshape(1, -1, 1, 1))

    def conv(y, w, b, pad):
        out = jax.lax.conv_general_dilated(
            y.astype(jnp.bfloat16), w.astype(jnp.bfloat16), (1, 1),
            [(pad, pad), (pad, pad)],
            dimension_numbers=("NCHW", "OIHW", "NCHW"),
            preferred_element_type=jnp.float32)
        return out + b.reshape(1, -1, 1, 1)

    y = jnp.maximum(bn(conv(x, p["w1"], p["b1"], 0), p["g1"], p["be1"]), 0.0)
    uh = jnp.asarray(_upsample_matrix(H), jnp.float32)
    uw = jnp.asarray(_upsample_matrix(W), jnp.float32)
    y = jnp.einsum("qw,nchw->nchq", uw, y, precision=hi)     # W upsample (f32, like kernel)
    y = jnp.einsum("ph,nchq->ncpq", uh, y, precision=hi)     # H upsample
    y = jnp.maximum(bn(conv(y, p["w2"], p["b2"], 1), p["ga"], p["ba"]), 0.0)
    y = jnp.maximum(bn(y, p["gb"], p["bb"]), 0.0)
    y = jnp.maximum(bn(conv(y, p["w3"], p["b3"], 0), p["g3"], p["be3"]), 0.0)
    # ChannelSE
    m = y.mean(axis=(2, 3))
    m = jnp.maximum(m @ p["l1w"].T + p["l1b"], 0.0)
    m = 1.0 / (1.0 + jnp.exp(-(m @ p["l2w"].T + p["l2b"])))
    cse = y * m[:, :, None, None]
    # SpatialSE (bf16 operands mirrored, f32 accumulation)
    s = jnp.einsum("c,nchw->nhw",
                   p["ws"].reshape(Cf).astype(jnp.bfloat16).astype(jnp.float32),
                   y.astype(jnp.bfloat16).astype(jnp.float32),
                   precision=hi) + p["wsb"].reshape(())
    s = 1.0 / (1.0 + jnp.exp(-s))
    sse = y * s[:, None, :, :]
    return cse + sse


if __name__ == "__main__":
    N, Cin, H, W = 2, 16, 8, 8        # in_channels=16 -> mid channels 4
    Cf = 8                            # n_filters
    C1 = Cin // 4

    key = jax.random.PRNGKey(0)
    ks = jax.random.split(key, 14)

    def uinit(k, shape, fan_in):
        b = 1.0 / math.sqrt(fan_in)
        return jax.random.uniform(k, shape, jnp.float32, -b, b)

    x = jax.random.normal(ks[0], (N, Cin, H, W), jnp.float32)

    p = dict(
        # conv1 (1x1) + norm1
        w1=uinit(ks[1], (C1, Cin, 1, 1), Cin), b1=uinit(ks[2], (C1,), Cin),
        g1=jnp.ones((C1,), jnp.float32), be1=jnp.zeros((C1,), jnp.float32),
        # ConvUp conv3x3(pad=1) + ConvUp.norm1
        w2=uinit(ks[3], (C1, C1, 3, 3), C1 * 9), b2=uinit(ks[4], (C1,), C1 * 9),
        ga=jnp.ones((C1,), jnp.float32), ba=jnp.zeros((C1,), jnp.float32),
        # norm2
        gb=jnp.ones((C1,), jnp.float32), bb=jnp.zeros((C1,), jnp.float32),
        # conv3 (1x1) + norm3
        w3=uinit(ks[5], (Cf, C1, 1, 1), C1), b3=uinit(ks[6], (Cf,), C1),
        g3=jnp.ones((Cf,), jnp.float32), be3=jnp.zeros((Cf,), jnp.float32),
        # ChannelSE linears (with bias)
        l1w=uinit(ks[7], (Cf // 2, Cf), Cf), l1b=uinit(ks[8], (Cf // 2,), Cf),
        l2w=uinit(ks[9], (Cf, Cf // 2), Cf // 2), l2b=uinit(ks[10], (Cf,), Cf // 2),
        # SpatialSE 1x1 conv (with bias)
        ws=uinit(ks[11], (1, Cf, 1, 1), Cf), wsb=uinit(ks[12], (1,), Cf),
    )

    out = jax.block_until_ready(decoder_blockup(x, p))
    ref = jax.block_until_ready(reference(x, p))

    assert out.shape == (N, Cf, 2 * H, 2 * W), out.shape
    assert jnp.allclose(out, ref, atol=1e-2, rtol=1e-2), float(jnp.max(jnp.abs(out - ref)))
    print("KERNEL_OK")
</pallas_src>

<mosaic_0001>
module attributes {stable_mosaic.version = 11 : i64} {
  func.func @decoder_blockup_kernel(%arg0: i32, %arg1: memref<16x512xbf16, #tpu.memory_space<vmem>>, %arg2: memref<4x16xbf16, #tpu.memory_space<vmem>>, %arg3: memref<4x1xf32, #tpu.memory_space<vmem>>, %arg4: memref<4x1xf32, #tpu.memory_space<vmem>>, %arg5: memref<6x512xf32, #tpu.memory_space<vmem>>, %arg6: memref<9x4x4xbf16, #tpu.memory_space<vmem>>, %arg7: memref<9x512xf32, #tpu.memory_space<vmem>>, %arg8: memref<4x1xf32, #tpu.memory_space<vmem>>, %arg9: memref<4x1xf32, #tpu.memory_space<vmem>>, %arg10: memref<4x1xf32, #tpu.memory_space<vmem>>, %arg11: memref<4x1xf32, #tpu.memory_space<vmem>>, %arg12: memref<8x4xbf16, #tpu.memory_space<vmem>>, %arg13: memref<8x1xf32, #tpu.memory_space<vmem>>, %arg14: memref<8x1xf32, #tpu.memory_space<vmem>>, %arg15: memref<512x2xf32, #tpu.memory_space<vmem>>, %arg16: memref<2x512xf32, #tpu.memory_space<vmem>>, %arg17: memref<4x8xf32, #tpu.memory_space<vmem>>, %arg18: memref<4x1xf32, #tpu.memory_space<vmem>>, %arg19: memref<8x4xf32, #tpu.memory_space<vmem>>, %arg20: memref<8x1xf32, #tpu.memory_space<vmem>>, %arg21: memref<1x8xbf16, #tpu.memory_space<vmem>>, %arg22: memref<1x1xf32, #tpu.memory_space<vmem>>, %arg23: memref<8x512xf32, #tpu.memory_space<vmem>>) attributes {dimension_semantics = [#tpu.dimension_semantics<arbitrary>], iteration_bounds = array<i64: 1>, scalar_prefetch = 0 : i64, scratch_operands = 0 : i64, tpu.core_type = #tpu.core_type<tc>, window_params = [{pipeline_mode = #tpu.pipeline_mode<synchronous>, transform_indices = @transform_0, window_bounds = array<i64: 16, 512>}, {pipeline_mode = #tpu.pipeline_mode<synchronous>, transform_indices = @transform_1, window_bounds = array<i64: 4, 16>}, {pipeline_mode = #tpu.pipeline_mode<synchronous>, transform_indices = @transform_2, window_bounds = array<i64: 4, 1>}, {pipeline_mode = #tpu.pipeline_mode<synchronous>, transform_indices = @transform_3, window_bounds = array<i64: 4, 1>}, {pipeline_mode = #tpu.pipeline_mode<synchronous>, transform_indices = @transform_4, window_bounds = array<i64: 6, 512>}, {pipeline_mode = #tpu.pipeline_mode<synchronous>, transform_indices = @transform_5, window_bounds = array<i64: 9, 4, 4>}, {pipeline_mode = #tpu.pipeline_mode<synchronous>, transform_indices = @transform_6, window_bounds = array<i64: 9, 512>}, {pipeline_mode = #tpu.pipeline_mode<synchronous>, transform_indices = @transform_7, window_bounds = array<i64: 4, 1>}, {pipeline_mode = #tpu.pipeline_mode<synchronous>, transform_indices = @transform_8, window_bounds = array<i64: 4, 1>}, {pipeline_mode = #tpu.pipeline_mode<synchronous>, transform_indices = @transform_9, window_bounds = array<i64: 4, 1>}, {pipeline_mode = #tpu.pipeline_mode<synchronous>, transform_indices = @transform_10, window_bounds = array<i64: 4, 1>}, {pipeline_mode = #tpu.pipeline_mode<synchronous>, transform_indices = @transform_11, window_bounds = array<i64: 8, 4>}, {pipeline_mode = #tpu.pipeline_mode<synchronous>, transform_indices = @transform_12, window_bounds = array<i64: 8, 1>}, {pipeline_mode = #tpu.pipeline_mode<synchronous>, transform_indices = @transform_13, window_bounds = array<i64: 8, 1>}, {pipeline_mode = #tpu.pipeline_mode<synchronous>, transform_indices = @transform_14, window_bounds = array<i64: 512, 2>}, {pipeline_mode = #tpu.pipeline_mode<synchronous>, transform_indices = @transform_15, window_bounds = array<i64: 2, 512>}, {pipeline_mode = #tpu.pipeline_mode<synchronous>, transform_indices = @transform_16, window_bounds = array<i64: 4, 8>}, {pipeline_mode = #tpu.pipeline_mode<synchronous>, transform_indices = @transform_17, window_bounds = array<i64: 4, 1>}, {pipeline_mode = #tpu.pipeline_mode<synchronous>, transform_indices = @transform_18, window_bounds = array<i64: 8, 4>}, {pipeline_mode = #tpu.pipeline_mode<synchronous>, transform_indices = @transform_19, window_bounds = array<i64: 8, 1>}, {pipeline_mode = #tpu.pipeline_mode<synchronous>, transform_indices = @transform_20, window_bounds = array<i64: 1, 8>}, {pipeline_mode = #tpu.pipeline_mode<synchronous>, transform_indices = @transform_21, window_bounds = array<i64: 1, 1>}, {pipeline_mode = #tpu.pipeline_mode<synchronous>, transform_indices = @transform_22, window_bounds = array<i64: 8, 512>}]} {
    %c0 = arith.constant 0 : index
    %c0_0 = arith.constant 0 : index
    %0 = vector.load %arg2[%c0, %c0_0] : memref<4x16xbf16, #tpu.memory_space<vmem>>, vector<4x16xbf16>
    %c0_1 = arith.constant 0 : index
    %c0_2 = arith.constant 0 : index
    %1 = vector.load %arg1[%c0_1, %c0_2] : memref<16x512xbf16, #tpu.memory_space<vmem>>, vector<16x512xbf16>
    %cst = arith.constant dense<0.000000e+00> : vector<4x512xf32>
    %2 = tpu.matmul %0, %1, %cst {dimension_numbers = #tpu.dot_dimension_numbers<[1], [0], [0], [1], [0, 0, 1, 1], [], []>} : vector<4x16xbf16>, vector<16x512xbf16>, vector<4x512xf32> -> vector<4x512xf32>
    %c0_3 = arith.constant 0 : index
    %c0_4 = arith.constant 0 : index
    %3 = vector.load %arg3[%c0_3, %c0_4] : memref<4x1xf32, #tpu.memory_space<vmem>>, vector<4x1xf32>
    %c0_5 = arith.constant 0 : index
    %c0_6 = arith.constant 0 : index
    %4 = vector.load %arg4[%c0_5, %c0_6] : memref<4x1xf32, #tpu.memory_space<vmem>>, vector<4x1xf32>
    %cst_7 = arith.constant dense<0.000000e+00> : vector<4xf32>
    %5 = vector.multi_reduction <add>, %2, %cst_7 [1] : vector<4x512xf32> to vector<4xf32>
    %6 = vector.shape_cast %5 : vector<4xf32> to vector<4x1xf32>
    %cst_8 = arith.constant 0.001953125 : f32
    %7 = vector.broadcast %cst_8 : f32 to vector<4x1xf32>
    %8 = arith.mulf %6, %7 : vector<4x1xf32>
    %9 = arith.mulf %2, %2 : vector<4x512xf32>
    %cst_9 = arith.constant dense<0.000000e+00> : vector<4xf32>
    %10 = vector.multi_reduction <add>, %9, %cst_9 [1] : vector<4x512xf32> to vector<4xf32>
    %11 = vector.shape_cast %10 : vector<4xf32> to vector<4x1xf32>
    %cst_10 = arith.constant 0.001953125 : f32
    %12 = vector.broadcast %cst_10 : f32 to vector<4x1xf32>
    %13 = arith.mulf %11, %12 : vector<4x1xf32>
    %14 = arith.mulf %8, %8 : vector<4x1xf32>
    %15 = arith.subf %13, %14 : vector<4x1xf32>
    %cst_11 = arith.constant 0.000000e+00 : f32
    %16 = vector.broadcast %cst_11 : f32 to vector<4x1xf32>
    %17 = arith.maximumf %15, %16 : vector<4x1xf32>
    %cst_12 = arith.constant 9.99999974E-6 : f32
    %18 = vector.broadcast %cst_12 : f32 to vector<4x1xf32>
    %19 = arith.addf %17, %18 : vector<4x1xf32>
    %20 = math.rsqrt %19 : vector<4x1xf32>
    %21 = arith.mulf %3, %20 : vector<4x1xf32>
    %22 = arith.mulf %8, %21 : vector<4x1xf32>
    %23 = arith.subf %4, %22 : vector<4x1xf32>
    %24 = vector.broadcast %21 : vector<4x1xf32> to vector<4x512xf32>
    %25 = arith.mulf %2, %24 : vector<4x512xf32>
    %26 = vector.broadcast %23 : vector<4x1xf32> to vector<4x512xf32>
    %27 = arith.addf %25, %26 : vector<4x512xf32>
    %cst_13 = arith.constant 0.000000e+00 : f32
    %28 = vector.broadcast %cst_13 : f32 to vector<4x512xf32>
    %29 = arith.maximumf %27, %28 : vector<4x512xf32>
    %c0_14 = arith.constant 0 : index
    %c0_15 = arith.constant 0 : index
    %30 = vector.load %arg5[%c0_14, %c0_15] : memref<6x512xf32, #tpu.memory_space<vmem>>, vector<6x512xf32>
    %31 = vector.extract_strided_slice %30 {offsets = [0, 0], sizes = [1, 512], strides = [1, 1]} : vector<6x512xf32> to vector<1x512xf32>
    %c1_i32 = arith.constant 1 : i32
    %32 = tpu.dynamic_rotate %29 by %c1_i32 dim 1 : vector<4x512xf32>, i32 -> vector<4x512xf32>
    %33 = vector.broadcast %31 : vector<1x512xf32> to vector<4x512xf32>
    %34 = arith.mulf %33, %32 : vector<4x512xf32>
    %35 = vector.extract_strided_slice %30 {offsets = [1, 0], sizes = [1, 512], strides = [1, 1]} : vector<6x512xf32> to vector<1x512xf32>
    %c511_i32 = arith.constant 511 : i32
    %36 = tpu.dynamic_rotate %29 by %c511_i32 dim 1 : vector<4x512xf32>, i32 -> vector<4x512xf32>
    %37 = vector.broadcast %35 : vector<1x512xf32> to vector<4x512xf32>
    %38 = arith.mulf %37, %36 : vector<4x512xf32>
    %39 = arith.addf %34, %38 : vector<4x512xf32>
    %40 = vector.extract_strided_slice %30 {offsets = [2, 0], sizes = [1, 512], strides = [1, 1]} : vector<6x512xf32> to vector<1x512xf32>
    %41 = vector.broadcast %40 : vector<1x512xf32> to vector<4x512xf32>
    %42 = arith.mulf %41, %29 : vector<4x512xf32>
    %43 = arith.addf %39, %42 : vector<4x512xf32>
    %cst_16 = arith.constant 7.500000e-01 : f32
    %44 = vector.broadcast %cst_16 : f32 to vector<4x512xf32>
    %45 = arith.mulf %44, %29 : vector<4x512xf32>
    %cst_17 = arith.constant 2.500000e-01 : f32
    %46 = vector.broadcast %cst_17 : f32 to vector<4x512xf32>
    %47 = arith.mulf %46, %43 : vector<4x512xf32>
    %48 = arith.addf %45, %47 : vector<4x512xf32>
    %49 = vector.extract_strided_slice %30 {offsets = [3, 0], sizes = [1, 512], strides = [1, 1]} : vector<6x512xf32> to vector<1x512xf32>
    %c16_i32 = arith.constant 16 : i32
    %50 = tpu.dynamic_rotate %48 by %c16_i32 dim 1 : vector<4x512xf32>, i32 -> vector<4x512xf32>
    %51 = vector.broadcast %49 : vector<1x512xf32> to vector<4x512xf32>
    %52 = arith.mulf %51, %50 : vector<4x512xf32>
    %53 = vector.extract_strided_slice %30 {offsets = [4, 0], sizes = [1, 512], strides = [1, 1]} : vector<6x512xf32> to vector<1x512xf32>
    %c496_i32 = arith.constant 496 : i32
    %54 = tpu.dynamic_rotate %48 by %c496_i32 dim 1 : vector<4x512xf32>, i32 -> vector<4x512xf32>
    %55 = vector.broadcast %53 : vector<1x512xf32> to vector<4x512xf32>
    %56 = arith.mulf %55, %54 : vector<4x512xf32>
    %57 = arith.addf %52, %56 : vector<4x512xf32>
    %58 = vector.extract_strided_slice %30 {offsets = [5, 0], sizes = [1, 512], strides = [1, 1]} : vector<6x512xf32> to vector<1x512xf32>
    %59 = vector.broadcast %58 : vector<1x512xf32> to vector<4x512xf32>
    %60 = arith.mulf %59, %48 : vector<4x512xf32>
    %61 = arith.addf %57, %60 : vector<4x512xf32>
    %cst_18 = arith.constant 7.500000e-01 : f32
    %62 = vector.broadcast %cst_18 : f32 to vector<4x512xf32>
    %63 = arith.mulf %62, %48 : vector<4x512xf32>
    %cst_19 = arith.constant 2.500000e-01 : f32
    %64 = vector.broadcast %cst_19 : f32 to vector<4x512xf32>
    %65 = arith.mulf %64, %61 : vector<4x512xf32>
    %66 = arith.addf %63, %65 : vector<4x512xf32>
    %c0_20 = arith.constant 0 : index
    %c0_21 = arith.constant 0 : index
    %67 = vector.load %arg7[%c0_20, %c0_21] : memref<9x512xf32, #tpu.memory_space<vmem>>, vector<9x512xf32>
    %c17_i32 = arith.constant 17 : i32
    %68 = tpu.dynamic_rotate %66 by %c17_i32 dim 1 : vector<4x512xf32>, i32 -> vector<4x512xf32>
    %69 = vector.extract_strided_slice %67 {offsets = [0, 0], sizes = [1, 512], strides = [1, 1]} : vector<9x512xf32> to vector<1x512xf32>
    %70 = vector.broadcast %69 : vector<1x512xf32> to vector<4x512xf32>
    %71 = arith.mulf %68, %70 : vector<4x512xf32>
    %72 = arith.truncf %71 : vector<4x512xf32> to vector<4x512xbf16>
    %c0_22 = arith.constant 0 : index
    %c0_23 = arith.constant 0 : index
    %c0_24 = arith.constant 0 : index
    %73 = vector.load %arg6[%c0_22, %c0_23, %c0_24] : memref<9x4x4xbf16, #tpu.memory_space<vmem>>, vector<1x4x4xbf16>
    %74 = vector.shape_cast %73 : vector<1x4x4xbf16> to vector<4x4xbf16>
    %cst_25 = arith.constant dense<0.000000e+00> : vector<4x512xf32>
    %75 = tpu.matmul %74, %72, %cst_25 {dimension_numbers = #tpu.dot_dimension_numbers<[1], [0], [0], [1], [0, 0, 1, 1], [], []>} : vector<4x4xbf16>, vector<4x512xbf16>, vector<4x512xf32> -> vector<4x512xf32>
    %c16_i32_26 = arith.constant 16 : i32
    %76 = tpu.dynamic_rotate %66 by %c16_i32_26 dim 1 : vector<4x512xf32>, i32 -> vector<4x512xf32>
    %77 = vector.extract_strided_slice %67 {offsets = [1, 0], sizes = [1, 512], strides = [1, 1]} : vector<9x512xf32> to vector<1x512xf32>
    %78 = vector.broadcast %77 : vector<1x512xf32> to vector<4x512xf32>
    %79 = arith.mulf %76, %78 : vector<4x512xf32>
    %80 = arith.truncf %79 : vector<4x512xf32> to vector<4x512xbf16>
    %c1 = arith.constant 1 : index
    %c0_27 = arith.constant 0 : index
    %c0_28 = arith.constant 0 : index
    %81 = vector.load %arg6[%c1, %c0_27, %c0_28] : memref<9x4x4xbf16, #tpu.memory_space<vmem>>, vector<1x4x4xbf16>
    %82 = vector.shape_cast %81 : vector<1x4x4xbf16> to vector<4x4xbf16>
    %cst_29 = arith.constant dense<0.000000e+00> : vector<4x512xf32>
    %83 = tpu.matmul %82, %80, %cst_29 {dimension_numbers = #tpu.dot_dimension_numbers<[1], [0], [0], [1], [0, 0, 1, 1], [], []>} : vector<4x4xbf16>, vector<4x512xbf16>, vector<4x512xf32> -> vector<4x512xf32>
    %84 = arith.addf %75, %83 : vector<4x512xf32>
    %c15_i32 = arith.constant 15 : i32
    %85 = tpu.dynamic_rotate %66 by %c15_i32 dim 1 : vector<4x512xf32>, i32 -> vector<4x512xf32>
    %86 = vector.extract_strided_slice %67 {offsets = [2, 0], sizes = [1, 512], strides = [1, 1]} : vector<9x512xf32> to vector<1x512xf32>
    %87 = vector.broadcast %86 : vector<1x512xf32> to vector<4x512xf32>
    %88 = arith.mulf %85, %87 : vector<4x512xf32>
    %89 = arith.truncf %88 : vector<4x512xf32> to vector<4x512xbf16>
    %c2 = arith.constant 2 : index
    %c0_30 = arith.constant 0 : index
    %c0_31 = arith.constant 0 : index
    %90 = vector.load %arg6[%c2, %c0_30, %c0_31] : memref<9x4x4xbf16, #tpu.memory_space<vmem>>, vector<1x4x4xbf16>
    %91 = vector.shape_cast %90 : vector<1x4x4xbf16> to vector<4x4xbf16>
    %cst_32 = arith.constant dense<0.000000e+00> : vector<4x512xf32>
    %92 = tpu.matmul %91, %89, %cst_32 {dimension_numbers = #tpu.dot_dimension_numbers<[1], [0], [0], [1], [0, 0, 1, 1], [], []>} : vector<4x4xbf16>, vector<4x512xbf16>, vector<4x512xf32> -> vector<4x512xf32>
    %93 = arith.addf %84, %92 : vector<4x512xf32>
    %c1_i32_33 = arith.constant 1 : i32
    %94 = tpu.dynamic_rotate %66 by %c1_i32_33 dim 1 : vector<4x512xf32>, i32 -> vector<4x512xf32>
    %95 = vector.extract_strided_slice %67 {offsets = [3, 0], sizes = [1, 512], strides = [1, 1]} : vector<9x512xf32> to vector<1x512xf32>
    %96 = vector.broadcast %95 : vector<1x512xf32> to vector<4x512xf32>
    %97 = arith.mulf %94, %96 : vector<4x512xf32>
    %98 = arith.truncf %97 : vector<4x512xf32> to vector<4x512xbf16>
    %c3 = arith.constant 3 : index
    %c0_34 = arith.constant 0 : index
    %c0_35 = arith.constant 0 : index
    %99 = vector.load %arg6[%c3, %c0_34, %c0_35] : memref<9x4x4xbf16, #tpu.memory_space<vmem>>, vector<1x4x4xbf16>
    %100 = vector.shape_cast %99 : vector<1x4x4xbf16> to vector<4x4xbf16>
    %cst_36 = arith.constant dense<0.000000e+00> : vector<4x512xf32>
    %101 = tpu.matmul %100, %98, %cst_36 {dimension_numbers = #tpu.dot_dimension_numbers<[1], [0], [0], [1], [0, 0, 1, 1], [], []>} : vector<4x4xbf16>, vector<4x512xbf16>, vector<4x512xf32> -> vector<4x512xf32>
    %102 = arith.addf %93, %101 : vector<4x512xf32>
    %103 = vector.extract_strided_slice %67 {offsets = [4, 0], sizes = [1, 512], strides = [1, 1]} : vector<9x512xf32> to vector<1x512xf32>
    %104 = vector.broadcast %103 : vector<1x512xf32> to vector<4x512xf32>
    %105 = arith.mulf %66, %104 : vector<4x512xf32>
    %106 = arith.truncf %105 : vector<4x512xf32> to vector<4x512xbf16>
    %c4 = arith.constant 4 : index
    %c0_37 = arith.constant 0 : index
    %c0_38 = arith.constant 0 : index
    %107 = vector.load %arg6[%c4, %c0_37, %c0_38] : memref<9x4x4xbf16, #tpu.memory_space<vmem>>, vector<1x4x4xbf16>
    %108 = vector.shape_cast %107 : vector<1x4x4xbf16> to vector<4x4xbf16>
    %cst_39 = arith.constant dense<0.000000e+00> : vector<4x512xf32>
    %109 = tpu.matmul %108, %106, %cst_39 {dimension_numbers = #tpu.dot_dimension_numbers<[1], [0], [0], [1], [0, 0, 1, 1], [], []>} : vector<4x4xbf16>, vector<4x512xbf16>, vector<4x512xf32> -> vector<4x512xf32>
    %110 = arith.addf %102, %109 : vector<4x512xf32>
    %c511_i32_40 = arith.constant 511 : i32
    %111 = tpu.dynamic_rotate %66 by %c511_i32_40 dim 1 : vector<4x512xf32>, i32 -> vector<4x512xf32>
    %112 = vector.extract_strided_slice %67 {offsets = [5, 0], sizes = [1, 512], strides = [1, 1]} : vector<9x512xf32> to vector<1x512xf32>
    %113 = vector.broadcast %112 : vector<1x512xf32> to vector<4x512xf32>
    %114 = arith.mulf %111, %113 : vector<4x512xf32>
    %115 = arith.truncf %114 : vector<4x512xf32> to vector<4x512xbf16>
    %c5 = arith.constant 5 : index
    %c0_41 = arith.constant 0 : index
    %c0_42 = arith.constant 0 : index
    %116 = vector.load %arg6[%c5, %c0_41, %c0_42] : memref<9x4x4xbf16, #tpu.memory_space<vmem>>, vector<1x4x4xbf16>
    %117 = vector.shape_cast %116 : vector<1x4x4xbf16> to vector<4x4xbf16>
    %cst_43 = arith.constant dense<0.000000e+00> : vector<4x512xf32>
    %118 = tpu.matmul %117, %115, %cst_43 {dimension_numbers = #tpu.dot_dimension_numbers<[1], [0], [0], [1], [0, 0, 1, 1], [], []>} : vector<4x4xbf16>, vector<4x512xbf16>, vector<4x512xf32> -> vector<4x512xf32>
    %119 = arith.addf %110, %118 : vector<4x512xf32>
    %c497_i32 = arith.constant 497 : i32
    %120 = tpu.dynamic_rotate %66 by %c497_i32 dim 1 : vector<4x512xf32>, i32 -> vector<4x512xf32>
    %121 = vector.extract_strided_slice %67 {offsets = [6, 0], sizes = [1, 512], strides = [1, 1]} : vector<9x512xf32> to vector<1x512xf32>
    %122 = vector.broadcast %121 : vector<1x512xf32> to vector<4x512xf32>
    %123 = arith.mulf %120, %122 : vector<4x512xf32>
    %124 = arith.truncf %123 : vector<4x512xf32> to vector<4x512xbf16>
    %c6 = arith.constant 6 : index
    %c0_44 = arith.constant 0 : index
    %c0_45 = arith.constant 0 : index
    %125 = vector.load %arg6[%c6, %c0_44, %c0_45] : memref<9x4x4xbf16, #tpu.memory_space<vmem>>, vector<1x4x4xbf16>
    %126 = vector.shape_cast %125 : vector<1x4x4xbf16> to vector<4x4xbf16>
    %cst_46 = arith.constant dense<0.000000e+00> : vector<4x512xf32>
    %127 = tpu.matmul %126, %124, %cst_46 {dimension_numbers = #tpu.dot_dimension_numbers<[1], [0], [0], [1], [0, 0, 1, 1], [], []>} : vector<4x4xbf16>, vector<4x512xbf16>, vector<4x512xf32> -> vector<4x512xf32>
    %128 = arith.addf %119, %127 : vector<4x512xf32>
    %c496_i32_47 = arith.constant 496 : i32
    %129 = tpu.dynamic_rotate %66 by %c496_i32_47 dim 1 : vector<4x512xf32>, i32 -> vector<4x512xf32>
    %130 = vector.extract_strided_slice %67 {offsets = [7, 0], sizes = [1, 512], strides = [1, 1]} : vector<9x512xf32> to vector<1x512xf32>
    %131 = vector.broadcast %130 : vector<1x512xf32> to vector<4x512xf32>
    %132 = arith.mulf %129, %131 : vector<4x512xf32>
    %133 = arith.truncf %132 : vector<4x512xf32> to vector<4x512xbf16>
    %c7 = arith.constant 7 : index
    %c0_48 = arith.constant 0 : index
    %c0_49 = arith.constant 0 : index
    %134 = vector.load %arg6[%c7, %c0_48, %c0_49] : memref<9x4x4xbf16, #tpu.memory_space<vmem>>, vector<1x4x4xbf16>
    %135 = vector.shape_cast %134 : vector<1x4x4xbf16> to vector<4x4xbf16>
    %cst_50 = arith.constant dense<0.000000e+00> : vector<4x512xf32>
    %136 = tpu.matmul %135, %133, %cst_50 {dimension_numbers = #tpu.dot_dimension_numbers<[1], [0], [0], [1], [0, 0, 1, 1], [], []>} : vector<4x4xbf16>, vector<4x512xbf16>, vector<4x512xf32> -> vector<4x512xf32>
    %137 = arith.addf %128, %136 : vector<4x512xf32>
    %c495_i32 = arith.constant 495 : i32
    %138 = tpu.dynamic_rotate %66 by %c495_i32 dim 1 : vector<4x512xf32>, i32 -> vector<4x512xf32>
    %139 = vector.extract_strided_slice %67 {offsets = [8, 0], sizes = [1, 512], strides = [1, 1]} : vector<9x512xf32> to vector<1x512xf32>
    %140 = vector.broadcast %139 : vector<1x512xf32> to vector<4x512xf32>
    %141 = arith.mulf %138, %140 : vector<4x512xf32>
    %142 = arith.truncf %141 : vector<4x512xf32> to vector<4x512xbf16>
    %c8 = arith.constant 8 : index
    %c0_51 = arith.constant 0 : index
    %c0_52 = arith.constant 0 : index
    %143 = vector.load %arg6[%c8, %c0_51, %c0_52] : memref<9x4x4xbf16, #tpu.memory_space<vmem>>, vector<1x4x4xbf16>
    %144 = vector.shape_cast %143 : vector<1x4x4xbf16> to vector<4x4xbf16>
    %cst_53 = arith.constant dense<0.000000e+00> : vector<4x512xf32>
    %145 = tpu.matmul %144, %142, %cst_53 {dimension_numbers = #tpu.dot_dimension_numbers<[1], [0], [0], [1], [0, 0, 1, 1], [], []>} : vector<4x4xbf16>, vector<4x512xbf16>, vector<4x512xf32> -> vector<4x512xf32>
    %146 = arith.addf %137, %145 : vector<4x512xf32>
    %c0_54 = arith.constant 0 : index
    %c0_55 = arith.constant 0 : index
    %147 = vector.load %arg8[%c0_54, %c0_55] : memref<4x1xf32, #tpu.memory_space<vmem>>, vector<4x1xf32>
    %c0_56 = arith.constant 0 : index
    %c0_57 = arith.constant 0 : index
    %148 = vector.load %arg9[%c0_56, %c0_57] : memref<4x1xf32, #tpu.memory_space<vmem>>, vector<4x1xf32>
    %cst_58 = arith.constant dense<0.000000e+00> : vector<4xf32>
    %149 = vector.multi_reduction <add>, %146, %cst_58 [1] : vector<4x512xf32> to vector<4xf32>
    %150 = vector.shape_cast %149 : vector<4xf32> to vector<4x1xf32>
    %cst_59 = arith.constant 0.001953125 : f32
    %151 = vector.broadcast %cst_59 : f32 to vector<4x1xf32>
    %152 = arith.mulf %150, %151 : vector<4x1xf32>
    %153 = arith.mulf %146, %146 : vector<4x512xf32>
    %cst_60 = arith.constant dense<0.000000e+00> : vector<4xf32>
    %154 = vector.multi_reduction <add>, %153, %cst_60 [1] : vector<4x512xf32> to vector<4xf32>
    %155 = vector.shape_cast %154 : vector<4xf32> to vector<4x1xf32>
    %cst_61 = arith.constant 0.001953125 : f32
    %156 = vector.broadcast %cst_61 : f32 to vector<4x1xf32>
    %157 = arith.mulf %155, %156 : vector<4x1xf32>
    %158 = arith.mulf %152, %152 : vector<4x1xf32>
    %159 = arith.subf %157, %158 : vector<4x1xf32>
    %cst_62 = arith.constant 0.000000e+00 : f32
    %160 = vector.broadcast %cst_62 : f32 to vector<4x1xf32>
    %161 = arith.maximumf %159, %160 : vector<4x1xf32>
    %cst_63 = arith.constant 9.99999974E-6 : f32
    %162 = vector.broadcast %cst_63 : f32 to vector<4x1xf32>
    %163 = arith.addf %161, %162 : vector<4x1xf32>
    %164 = math.rsqrt %163 : vector<4x1xf32>
    %165 = arith.mulf %147, %164 : vector<4x1xf32>
    %166 = arith.mulf %152, %165 : vector<4x1xf32>
    %167 = arith.subf %148, %166 : vector<4x1xf32>
    %168 = vector.broadcast %165 : vector<4x1xf32> to vector<4x512xf32>
    %169 = arith.mulf %146, %168 : vector<4x512xf32>
    %170 = vector.broadcast %167 : vector<4x1xf32> to vector<4x512xf32>
    %171 = arith.addf %169, %170 : vector<4x512xf32>
    %cst_64 = arith.constant 0.000000e+00 : f32
    %172 = vector.broadcast %cst_64 : f32 to vector<4x512xf32>
    %173 = arith.maximumf %171, %172 : vector<4x512xf32>
    %c0_65 = arith.constant 0 : index
    %c0_66 = arith.constant 0 : index
    %174 = vector.load %arg10[%c0_65, %c0_66] : memref<4x1xf32, #tpu.memory_space<vmem>>, vector<4x1xf32>
    %c0_67 = arith.constant 0 : index
    %c0_68 = arith.constant 0 : index
    %175 = vector.load %arg11[%c0_67, %c0_68] : memref<4x1xf32, #tpu.memory_space<vmem>>, vector<4x1xf32>
    %cst_69 = arith.constant dense<0.000000e+00> : vector<4xf32>
    %176 = vector.multi_reduction <add>, %173, %cst_69 [1] : vector<4x512xf32> to vector<4xf32>
    %177 = vector.shape_cast %176 : vector<4xf32> to vector<4x1xf32>
    %cst_70 = arith.constant 0.001953125 : f32
    %178 = vector.broadcast %cst_70 : f32 to vector<4x1xf32>
    %179 = arith.mulf %177, %178 : vector<4x1xf32>
    %180 = arith.mulf %173, %173 : vector<4x512xf32>
    %cst_71 = arith.constant dense<0.000000e+00> : vector<4xf32>
    %181 = vector.multi_reduction <add>, %180, %cst_71 [1] : vector<4x512xf32> to vector<4xf32>
    %182 = vector.shape_cast %181 : vector<4xf32> to vector<4x1xf32>
    %cst_72 = arith.constant 0.001953125 : f32
    %183 = vector.broadcast %cst_72 : f32 to vector<4x1xf32>
    %184 = arith.mulf %182, %183 : vector<4x1xf32>
    %185 = arith.mulf %179, %179 : vector<4x1xf32>
    %186 = arith.subf %184, %185 : vector<4x1xf32>
    %cst_73 = arith.constant 0.000000e+00 : f32
    %187 = vector.broadcast %cst_73 : f32 to vector<4x1xf32>
    %188 = arith.maximumf %186, %187 : vector<4x1xf32>
    %cst_74 = arith.constant 9.99999974E-6 : f32
    %189 = vector.broadcast %cst_74 : f32 to vector<4x1xf32>
    %190 = arith.addf %188, %189 : vector<4x1xf32>
    %191 = math.rsqrt %190 : vector<4x1xf32>
    %192 = arith.mulf %174, %191 : vector<4x1xf32>
    %193 = arith.mulf %179, %192 : vector<4x1xf32>
    %194 = arith.subf %175, %193 : vector<4x1xf32>
    %195 = vector.broadcast %192 : vector<4x1xf32> to vector<4x512xf32>
    %196 = arith.mulf %173, %195 : vector<4x512xf32>
    %197 = vector.broadcast %194 : vector<4x1xf32> to vector<4x512xf32>
    %198 = arith.addf %196, %197 : vector<4x512xf32>
    %cst_75 = arith.constant 0.000000e+00 : f32
    %199 = vector.broadcast %cst_75 : f32 to vector<4x512xf32>
    %200 = arith.maximumf %198, %199 : vector<4x512xf32>
    %c0_76 = arith.constant 0 : index
    %c0_77 = arith.constant 0 : index
    %201 = vector.load %arg12[%c0_76, %c0_77] : memref<8x4xbf16, #tpu.memory_space<vmem>>, vector<8x4xbf16>
    %202 = arith.truncf %200 : vector<4x512xf32> to vector<4x512xbf16>
    %cst_78 = arith.constant dense<0.000000e+00> : vector<8x512xf32>
    %203 = tpu.matmul %201, %202, %cst_78 {dimension_numbers = #tpu.dot_dimension_numbers<[1], [0], [0], [1], [0, 0, 1, 1], [], []>} : vector<8x4xbf16>, vector<4x512xbf16>, vector<8x512xf32> -> vector<8x512xf32>
    %c0_79 = arith.constant 0 : index
    %c0_80 = arith.constant 0 : index
    %204 = vector.load %arg13[%c0_79, %c0_80] : memref<8x1xf32, #tpu.memory_space<vmem>>, vector<8x1xf32>
    %c0_81 = arith.constant 0 : index
    %c0_82 = arith.constant 0 : index
    %205 = vector.load %arg14[%c0_81, %c0_82] : memref<8x1xf32, #tpu.memory_space<vmem>>, vector<8x1xf32>
    %cst_83 = arith.constant dense<0.000000e+00> : vector<8xf32>
    %206 = vector.multi_reduction <add>, %203, %cst_83 [1] : vector<8x512xf32> to vector<8xf32>
    %207 = vector.shape_cast %206 : vector<8xf32> to vector<8x1xf32>
    %cst_84 = arith.constant 0.001953125 : f32
    %208 = vector.broadcast %cst_84 : f32 to vector<8x1xf32>
    %209 = arith.mulf %207, %208 : vector<8x1xf32>
    %210 = arith.mulf %203, %203 : vector<8x512xf32>
    %cst_85 = arith.constant dense<0.000000e+00> : vector<8xf32>
    %211 = vector.multi_reduction <add>, %210, %cst_85 [1] : vector<8x512xf32> to vector<8xf32>
    %212 = vector.shape_cast %211 : vector<8xf32> to vector<8x1xf32>
    %cst_86 = arith.constant 0.001953125 : f32
    %213 = vector.broadcast %cst_86 : f32 to vector<8x1xf32>
    %214 = arith.mulf %212, %213 : vector<8x1xf32>
    %215 = arith.mulf %209, %209 : vector<8x1xf32>
    %216 = arith.subf %214, %215 : vector<8x1xf32>
    %cst_87 = arith.constant 0.000000e+00 : f32
    %217 = vector.broadcast %cst_87 : f32 to vector<8x1xf32>
    %218 = arith.maximumf %216, %217 : vector<8x1xf32>
    %cst_88 = arith.constant 9.99999974E-6 : f32
    %219 = vector.broadcast %cst_88 : f32 to vector<8x1xf32>
    %220 = arith.addf %218, %219 : vector<8x1xf32>
    %221 = math.rsqrt %220 : vector<8x1xf32>
    %222 = arith.mulf %204, %221 : vector<8x1xf32>
    %223 = arith.mulf %209, %222 : vector<8x1xf32>
    %224 = arith.subf %205, %223 : vector<8x1xf32>
    %225 = vector.broadcast %222 : vector<8x1xf32> to vector<8x512xf32>
    %226 = arith.mulf %203, %225 : vector<8x512xf32>
    %227 = vector.broadcast %224 : vector<8x1xf32> to vector<8x512xf32>
    %228 = arith.addf %226, %227 : vector<8x512xf32>
    %cst_89 = arith.constant 0.000000e+00 : f32
    %229 = vector.broadcast %cst_89 : f32 to vector<8x512xf32>
    %230 = arith.maximumf %228, %229 : vector<8x512xf32>
    %c0_90 = arith.constant 0 : index
    %c0_91 = arith.constant 0 : index
    %231 = vector.load %arg15[%c0_90, %c0_91] : memref<512x2xf32, #tpu.memory_space<vmem>>, vector<512x2xf32>
    %cst_92 = arith.constant dense<0.000000e+00> : vector<8x2xf32>
    %232 = tpu.matmul %230, %231, %cst_92 {dimension_numbers = #tpu.dot_dimension_numbers<[1], [0], [0], [1], [0, 0, 1, 1], [], []>} : vector<8x512xf32>, vector<512x2xf32>, vector<8x2xf32> -> vector<8x2xf32>
    %cst_93 = arith.constant 3.906250e-03 : f32
    %233 = vector.broadcast %cst_93 : f32 to vector<8x2xf32>
    %234 = arith.mulf %232, %233 : vector<8x2xf32>
    %c0_94 = arith.constant 0 : index
    %c0_95 = arith.constant 0 : index
    %235 = vector.load %arg17[%c0_94, %c0_95] : memref<4x8xf32, #tpu.memory_space<vmem>>, vector<4x8xf32>
    %cst_96 = arith.constant dense<0.000000e+00> : vector<4x2xf32>
    %236 = tpu.matmul %235, %234, %cst_96 {dimension_numbers = #tpu.dot_dimension_numbers<[1], [0], [0], [1], [0, 0, 1, 1], [], []>} : vector<4x8xf32>, vector<8x2xf32>, vector<4x2xf32> -> vector<4x2xf32>
    %c0_97 = arith.constant 0 : index
    %c0_98 = arith.constant 0 : index
    %237 = vector.load %arg18[%c0_97, %c0_98] : memref<4x1xf32, #tpu.memory_space<vmem>>, vector<4x1xf32>
    %238 = vector.broadcast %237 : vector<4x1xf32> to vector<4x2xf32>
    %239 = arith.addf %236, %238 : vector<4x2xf32>
    %cst_99 = arith.constant 0.000000e+00 : f32
    %240 = vector.broadcast %cst_99 : f32 to vector<4x2xf32>
    %241 = arith.maximumf %239, %240 : vector<4x2xf32>
    %c0_100 = arith.constant 0 : index
    %c0_101 = arith.constant 0 : index
    %242 = vector.load %arg19[%c0_100, %c0_101] : memref<8x4xf32, #tpu.memory_space<vmem>>, vector<8x4xf32>
    %cst_102 = arith.constant dense<0.000000e+00> : vector<8x2xf32>
    %243 = tpu.matmul %242, %241, %cst_102 {dimension_numbers = #tpu.dot_dimension_numbers<[1], [0], [0], [1], [0, 0, 1, 1], [], []>} : vector<8x4xf32>, vector<4x2xf32>, vector<8x2xf32> -> vector<8x2xf32>
    %c0_103 = arith.constant 0 : index
    %c0_104 = arith.constant 0 : index
    %244 = vector.load %arg20[%c0_103, %c0_104] : memref<8x1xf32, #tpu.memory_space<vmem>>, vector<8x1xf32>
    %245 = vector.broadcast %244 : vector<8x1xf32> to vector<8x2xf32>
    %246 = arith.addf %243, %245 : vector<8x2xf32>
    %cst_105 = arith.constant 0.000000e+00 : f32
    %247 = vector.broadcast %cst_105 : f32 to vector<8x2xf32>
    %248 = arith.subf %247, %246 : vector<8x2xf32>
    %249 = math.exp %248 : vector<8x2xf32>
    %cst_106 = arith.constant 1.000000e+00 : f32
    %250 = vector.broadcast %cst_106 : f32 to vector<8x2xf32>
    %251 = arith.addf %250, %249 : vector<8x2xf32>
    %cst_107 = arith.constant 1.000000e+00 : f32
    %252 = vector.broadcast %cst_107 : f32 to vector<8x2xf32>
    %253 = arith.divf %252, %251 : vector<8x2xf32>
    %c0_108 = arith.constant 0 : index
    %c0_109 = arith.constant 0 : index
    %254 = vector.load %arg16[%c0_108, %c0_109] : memref<2x512xf32, #tpu.memory_space<vmem>>, vector<2x512xf32>
    %cst_110 = arith.constant dense<0.000000e+00> : vector<8x512xf32>
    %255 = tpu.matmul %253, %254, %cst_110 {dimension_numbers = #tpu.dot_dimension_numbers<[1], [0], [0], [1], [0, 0, 1, 1], [], []>} : vector<8x2xf32>, vector<2x512xf32>, vector<8x512xf32> -> vector<8x512xf32>
    %c0_111 = arith.constant 0 : index
    %c0_112 = arith.constant 0 : index
    %256 = vector.load %arg21[%c0_111, %c0_112] : memref<1x8xbf16, #tpu.memory_space<vmem>>, vector<1x8xbf16>
    %257 = arith.truncf %230 : vector<8x512xf32> to vector<8x512xbf16>
    %cst_113 = arith.constant dense<0.000000e+00> : vector<1x512xf32>
    %258 = tpu.matmul %256, %257, %cst_113 {dimension_numbers = #tpu.dot_dimension_numbers<[1], [0], [0], [1], [0, 0, 1, 1], [], []>} : vector<1x8xbf16>, vector<8x512xbf16>, vector<1x512xf32> -> vector<1x512xf32>
    %c0_114 = arith.constant 0 : index
    %c0_115 = arith.constant 0 : index
    %259 = vector.load %arg22[%c0_114, %c0_115] : memref<1x1xf32, #tpu.memory_space<vmem>>, vector<1x1xf32>
    %260 = vector.broadcast %259 : vector<1x1xf32> to vector<1x512xf32>
    %261 = arith.addf %258, %260 : vector<1x512xf32>
    %cst_116 = arith.constant 0.000000e+00 : f32
    %262 = vector.broadcast %cst_116 : f32 to vector<1x512xf32>
    %263 = arith.subf %262, %261 : vector<1x512xf32>
    %264 = math.exp %263 : vector<1x512xf32>
    %cst_117 = arith.constant 1.000000e+00 : f32
    %265 = vector.broadcast %cst_117 : f32 to vector<1x512xf32>
    %266 = arith.addf %265, %264 : vector<1x512xf32>
    %cst_118 = arith.constant 1.000000e+00 : f32
    %267 = vector.broadcast %cst_118 : f32 to vector<1x512xf32>
    %268 = arith.divf %267, %266 : vector<1x512xf32>
    %269 = vector.broadcast %268 : vector<1x512xf32> to vector<8x512xf32>
    %270 = arith.addf %255, %269 : vector<8x512xf32>
    %271 = arith.mulf %230, %270 : vector<8x512xf32>
    %c0_119 = arith.constant 0 : index
    %c0_120 = arith.constant 0 : index
    %272 = vector.load %arg23[%c0_119, %c0_120] : memref<8x512xf32, #tpu.memory_space<vmem>>, vector<8x512xf32>
    tpu.vector_store %arg23[%c0_119, %c0_120], %271 {strides = array<i32>} : memref<8x512xf32, #tpu.memory_space<vmem>>, vector<8x512xf32>,
    return
  }
  func.func @transform_0(%arg0: i32) -> (i32, i32) {
    %c0_i32 = arith.constant 0 : i32
    %c0_i32_0 = arith.constant 0 : i32
    %c0_i32_1 = arith.constant 0 : i32
    return %c0_i32, %c0_i32_0 : i32, i32
  }
  func.func @transform_1(%arg0: i32) -> (i32, i32) {
    %c0_i32 = arith.constant 0 : i32
    %c0_i32_0 = arith.constant 0 : i32
    %c0_i32_1 = arith.constant 0 : i32
    return %c0_i32, %c0_i32_0 : i32, i32
  }
  func.func @transform_2(%arg0: i32) -> (i32, i32) {
    %c0_i32 = arith.constant 0 : i32
    %c0_i32_0 = arith.constant 0 : i32
    %c0_i32_1 = arith.constant 0 : i32
    return %c0_i32, %c0_i32_0 : i32, i32
  }
  func.func @transform_3(%arg0: i32) -> (i32, i32) {
    %c0_i32 = arith.constant 0 : i32
    %c0_i32_0 = arith.constant 0 : i32
    %c0_i32_1 = arith.constant 0 : i32
    return %c0_i32, %c0_i32_0 : i32, i32
  }
  func.func @transform_4(%arg0: i32) -> (i32, i32) {
    %c0_i32 = arith.constant 0 : i32
    %c0_i32_0 = arith.constant 0 : i32
    %c0_i32_1 = arith.constant 0 : i32
    return %c0_i32, %c0_i32_0 : i32, i32
  }
  func.func @transform_5(%arg0: i32) -> (i32, i32, i32) {
    %c0_i32 = arith.constant 0 : i32
    %c0_i32_0 = arith.constant 0 : i32
    %c0_i32_1 = arith.constant 0 : i32
    %c0_i32_2 = arith.constant 0 : i32
    return %c0_i32, %c0_i32_0, %c0_i32_1 : i32, i32, i32
  }
  func.func @transform_6(%arg0: i32) -> (i32, i32) {
    %c0_i32 = arith.constant 0 : i32
    %c0_i32_0 = arith.constant 0 : i32
    %c0_i32_1 = arith.constant 0 : i32
    return %c0_i32, %c0_i32_0 : i32, i32
  }
  func.func @transform_7(%arg0: i32) -> (i32, i32) {
    %c0_i32 = arith.constant 0 : i32
    %c0_i32_0 = arith.constant 0 : i32
    %c0_i32_1 = arith.constant 0 : i32
    return %c0_i32, %c0_i32_0 : i32, i32
  }
  func.func @transform_8(%arg0: i32) -> (i32, i32) {
    %c0_i32 = arith.constant 0 : i32
    %c0_i32_0 = arith.constant 0 : i32
    %c0_i32_1 = arith.constant 0 : i32
    return %c0_i32, %c0_i32_0 : i32, i32
  }
  func.func @transform_9(%arg0: i32) -> (i32, i32) {
    %c0_i32 = arith.constant 0 : i32
    %c0_i32_0 = arith.constant 0 : i32
    %c0_i32_1 = arith.constant 0 : i32
    return %c0_i32, %c0_i32_0 : i32, i32
  }
  func.func @transform_10(%arg0: i32) -> (i32, i32) {
    %c0_i32 = arith.constant 0 : i32
    %c0_i32_0 = arith.constant 0 : i32
    %c0_i32_1 = arith.constant 0 : i32
    return %c0_i32, %c0_i32_0 : i32, i32
  }
  func.func @transform_11(%arg0: i32) -> (i32, i32) {
    %c0_i32 = arith.constant 0 : i32
    %c0_i32_0 = arith.constant 0 : i32
    %c0_i32_1 = arith.constant 0 : i32
    return %c0_i32, %c0_i32_0 : i32, i32
  }
  func.func @transform_12(%arg0: i32) -> (i32, i32) {
    %c0_i32 = arith.constant 0 : i32
    %c0_i32_0 = arith.constant 0 : i32
    %c0_i32_1 = arith.constant 0 : i32
    return %c0_i32, %c0_i32_0 : i32, i32
  }
  func.func @transform_13(%arg0: i32) -> (i32, i32) {
    %c0_i32 = arith.constant 0 : i32
    %c0_i32_0 = arith.constant 0 : i32
    %c0_i32_1 = arith.constant 0 : i32
    return %c0_i32, %c0_i32_0 : i32, i32
  }
  func.func @transform_14(%arg0: i32) -> (i32, i32) {
    %c0_i32 = arith.constant 0 : i32
    %c0_i32_0 = arith.constant 0 : i32
    %c0_i32_1 = arith.constant 0 : i32
    return %c0_i32, %c0_i32_0 : i32, i32
  }
  func.func @transform_15(%arg0: i32) -> (i32, i32) {
    %c0_i32 = arith.constant 0 : i32
    %c0_i32_0 = arith.constant 0 : i32
    %c0_i32_1 = arith.constant 0 : i32
    return %c0_i32, %c0_i32_0 : i32, i32
  }
  func.func @transform_16(%arg0: i32) -> (i32, i32) {
    %c0_i32 = arith.constant 0 : i32
    %c0_i32_0 = arith.constant 0 : i32
    %c0_i32_1 = arith.constant 0 : i32
    return %c0_i32, %c0_i32_0 : i32, i32
  }
  func.func @transform_17(%arg0: i32) -> (i32, i32) {
    %c0_i32 = arith.constant 0 : i32
    %c0_i32_0 = arith.constant 0 : i32
    %c0_i32_1 = arith.constant 0 : i32
    return %c0_i32, %c0_i32_0 : i32, i32
  }
  func.func @transform_18(%arg0: i32) -> (i32, i32) {
    %c0_i32 = arith.constant 0 : i32
    %c0_i32_0 = arith.constant 0 : i32
    %c0_i32_1 = arith.constant 0 : i32
    return %c0_i32, %c0_i32_0 : i32, i32
  }
  func.func @transform_19(%arg0: i32) -> (i32, i32) {
    %c0_i32 = arith.constant 0 : i32
    %c0_i32_0 = arith.constant 0 : i32
    %c0_i32_1 = arith.constant 0 : i32
    return %c0_i32, %c0_i32_0 : i32, i32
  }
  func.func @transform_20(%arg0: i32) -> (i32, i32) {
    %c0_i32 = arith.constant 0 : i32
    %c0_i32_0 = arith.constant 0 : i32
    %c0_i32_1 = arith.constant 0 : i32
    return %c0_i32, %c0_i32_0 : i32, i32
  }
  func.func @transform_21(%arg0: i32) -> (i32, i32) {
    %c0_i32 = arith.constant 0 : i32
    %c0_i32_0 = arith.constant 0 : i32
    %c0_i32_1 = arith.constant 0 : i32
    return %c0_i32, %c0_i32_0 : i32, i32
  }
  func.func @transform_22(%arg0: i32) -> (i32, i32) {
    %c0_i32 = arith.constant 0 : i32
    %c0_i32_0 = arith.constant 0 : i32
    %c0_i32_1 = arith.constant 0 : i32
    return %c0_i32, %c0_i32_0 : i32, i32
  }
}

</mosaic_0001>

<llo_original>
// kernel: tpu_custom_call.1
$region0: #{tpu_custom_call.1}
  #allocation0 [shape = 'u32[]', space=smem, size = 0x4, offset = 0x4, fixed_abs, tag = 'smem constant byte address 0x4 - core index']
  #allocation1 [shape = 'u32[72,128]{1,0:T(1,128)}', space=vmem, size = 0x9000, scoped, tag = 'internal scratch']
  #allocation2 [shape = 'f32[1,1]{1,0:T(1,128)S(1)}', space=vmem, size = 0x200, scoped, tag = 'scoped memory for tpu_custom_call.1']
  %s0 = inlined_call_operand.vmem [shape: bf16[16,512], index: 0, kind: input, shape index: {}]
  %s1 = inlined_call_operand.vmem [shape: bf16[4,16], index: 1, kind: input, shape index: {}]
  %s2 = inlined_call_operand.vmem [shape: f32[4,1], index: 2, kind: input, shape index: {}]
  %s3 = inlined_call_operand.vmem [shape: f32[4,1], index: 3, kind: input, shape index: {}]
  %s4 = inlined_call_operand.vmem [shape: f32[6,512], index: 4, kind: input, shape index: {}]
  %s5 = inlined_call_operand.vmem [shape: bf16[9,4,4], index: 5, kind: input, shape index: {}]
  %s6 = inlined_call_operand.vmem [shape: f32[9,512], index: 6, kind: input, shape index: {}]
  %s7 = inlined_call_operand.vmem [shape: f32[4,1], index: 7, kind: input, shape index: {}]
  %s8 = inlined_call_operand.vmem [shape: f32[4,1], index: 8, kind: input, shape index: {}]
  %s9 = inlined_call_operand.vmem [shape: f32[4,1], index: 9, kind: input, shape index: {}]
  %s10 = inlined_call_operand.vmem [shape: f32[4,1], index: 10, kind: input, shape index: {}]
  %s11 = inlined_call_operand.vmem [shape: bf16[8,4], index: 11, kind: input, shape index: {}]
  %s12 = inlined_call_operand.vmem [shape: f32[8,1], index: 12, kind: input, shape index: {}]
  %s13 = inlined_call_operand.vmem [shape: f32[8,1], index: 13, kind: input, shape index: {}]
  %s14 = inlined_call_operand.vmem [shape: f32[512,2], index: 14, kind: input, shape index: {}]
  %s15 = inlined_call_operand.vmem [shape: f32[2,512], index: 15, kind: input, shape index: {}]
  %s16 = inlined_call_operand.vmem [shape: f32[4,8], index: 16, kind: input, shape index: {}]
  %s17 = inlined_call_operand.vmem [shape: f32[4,1], index: 17, kind: input, shape index: {}]
  %s18 = inlined_call_operand.vmem [shape: f32[8,4], index: 18, kind: input, shape index: {}]
  %s19 = inlined_call_operand.vmem [shape: f32[8,1], index: 19, kind: input, shape index: {}]
  %s20 = inlined_call_operand.vmem [shape: bf16[1,8], index: 20, kind: input, shape index: {}]
  %s21 = inlined_call_operand.<no memory space> [shape: f32[1,1], index: 21, kind: input, shape index: {}]
  %s22 = inlined_call_operand.hbm [shape: f32[8,512], index: 22, kind: output, shape index: {}]
  %s23 = sld [smem:[#allocation0]]
  $region98: #{tpu_custom_call.1} parent=0
    _
  %s25 = ssub.s32 1, %s23
  %s26 = scalar_select 0, %s25, %s23
  %v27 = vstv %s21
  %28 = vst [vmem:[#allocation2] sm:$0x1] %v27
  $region1: #{tpu_custom_call.1} parent=0
    #allocation3 [shape = 'u8[16384]{0}', space=vmem, size = 0x4000, scoped, tag = 'output window, operand 0, single buffered']
    #allocation4 [shape = 's32[1]{0}', space=sflag, size = 0x4, scoped, tag = 'scoped memory for tpu_custom_call.1']
    %29 = vsyncpa [#allocation4], 0
    // Predicated region
    $region2: #{tpu_custom_call.1} parent=1 // pred_check
      _
    $region3: #{tpu_custom_call.1} parent=1 // pred_check_branch
      %31 = sbr.rel (0) target = $region5
    $region4: #{tpu_custom_call.1} parent=1 // pred_region
      _
    $region5: #{tpu_custom_call.1} parent=1 // pred_fallthru
      _
    // Predicated region
    $region6: #{tpu_custom_call.1} parent=1 // pred_check
      _
    $region7: #{tpu_custom_call.1} parent=1 // pred_check_branch
      %33 = sbr.rel (0) target = $region9
    $region8: #{tpu_custom_call.1} parent=1 // pred_region
      _
    $region9: #{tpu_custom_call.1} parent=1 // pred_fallthru
      _
    // Predicated region
    $region10: #{tpu_custom_call.1} parent=1 // pred_check
      _
    $region11: #{tpu_custom_call.1} parent=1 // pred_check_branch
      %35 = sbr.rel (0) target = $region13
    $region12: #{tpu_custom_call.1} parent=1 // pred_region
      _
    $region13: #{tpu_custom_call.1} parent=1 // pred_fallthru
      _
    // Predicated region
    $region14: #{tpu_custom_call.1} parent=1 // pred_check
      _
    $region15: #{tpu_custom_call.1} parent=1 // pred_check_branch
      %37 = sbr.rel (0) target = $region17
    $region16: #{tpu_custom_call.1} parent=1 // pred_region
      _
    $region17: #{tpu_custom_call.1} parent=1 // pred_fallthru
      _
    // Predicated region
    $region18: #{tpu_custom_call.1} parent=1 // pred_check
      _
    $region19: #{tpu_custom_call.1} parent=1 // pred_check_branch
      %39 = sbr.rel (0) target = $region21
    $region20: #{tpu_custom_call.1} parent=1 // pred_region
      _
    $region21: #{tpu_custom_call.1} parent=1 // pred_fallthru
      _
    // Predicated region
    $region22: #{tpu_custom_call.1} parent=1 // pred_check
      _
    $region23: #{tpu_custom_call.1} parent=1 // pred_check_branch
      %41 = sbr.rel (0) target = $region25
    $region24: #{tpu_custom_call.1} parent=1 // pred_region
      _
    $region25: #{tpu_custom_call.1} parent=1 // pred_fallthru
      _
    // Predicated region
    $region26: #{tpu_custom_call.1} parent=1 // pred_check
      _
    $region27: #{tpu_custom_call.1} parent=1 // pred_check_branch
      %43 = sbr.rel (0) target = $region29
    $region28: #{tpu_custom_call.1} parent=1 // pred_region
      _
    $region29: #{tpu_custom_call.1} parent=1 // pred_fallthru
      _
    // Predicated region
    $region30: #{tpu_custom_call.1} parent=1 // pred_check
      _
    $region31: #{tpu_custom_call.1} parent=1 // pred_check_branch
      %45 = sbr.rel (0) target = $region33
    $region32: #{tpu_custom_call.1} parent=1 // pred_region
      _
    $region33: #{tpu_custom_call.1} parent=1 // pred_fallthru
      _
    // Predicated region
    $region34: #{tpu_custom_call.1} parent=1 // pred_check
      _
    $region35: #{tpu_custom_call.1} parent=1 // pred_check_branch
      %47 = sbr.rel (0) target = $region37
    $region36: #{tpu_custom_call.1} parent=1 // pred_region
      _
    $region37: #{tpu_custom_call.1} parent=1 // pred_fallthru
      _
    // Predicated region
    $region38: #{tpu_custom_call.1} parent=1 // pred_check
      _
    $region39: #{tpu_custom_call.1} parent=1 // pred_check_branch
      %49 = sbr.rel (0) target = $region41
    $region40: #{tpu_custom_call.1} parent=1 // pred_region
      _
    $region41: #{tpu_custom_call.1} parent=1 // pred_fallthru
      _
    // Predicated region
    $region42: #{tpu_custom_call.1} parent=1 // pred_check
      _
    $region43: #{tpu_custom_call.1} parent=1 // pred_check_branch
      %51 = sbr.rel (0) target = $region45
    $region44: #{tpu_custom_call.1} parent=1 // pred_region
      _
    $region45: #{tpu_custom_call.1} parent=1 // pred_fallthru
      _
    // Predicated region
    $region46: #{tpu_custom_call.1} parent=1 // pred_check
      _
    $region47: #{tpu_custom_call.1} parent=1 // pred_check_branch
      %53 = sbr.rel (0) target = $region49
    $region48: #{tpu_custom_call.1} parent=1 // pred_region
      _
    $region49: #{tpu_custom_call.1} parent=1 // pred_fallthru
      _
    // Predicated region
    $region50: #{tpu_custom_call.1} parent=1 // pred_check
      _
    $region51: #{tpu_custom_call.1} parent=1 // pred_check_branch
      %55 = sbr.rel (0) target = $region53
    $region52: #{tpu_custom_call.1} parent=1 // pred_region
      _
    $region53: #{tpu_custom_call.1} parent=1 // pred_fallthru
      _
    // Predicated region
    $region54: #{tpu_custom_call.1} parent=1 // pred_check
      _
    $region55: #{tpu_custom_call.1} parent=1 // pred_check_branch
      %57 = sbr.rel (0) target = $region57
    $region56: #{tpu_custom_call.1} parent=1 // pred_region
      _
    $region57: #{tpu_custom_call.1} parent=1 // pred_fallthru
      _
    // Predicated region
    $region58: #{tpu_custom_call.1} parent=1 // pred_check
      _
    $region59: #{tpu_custom_call.1} parent=1 // pred_check_branch
      %59 = sbr.rel (0) target = $region61
    $region60: #{tpu_custom_call.1} parent=1 // pred_region
      _
    $region61: #{tpu_custom_call.1} parent=1 // pred_fallthru
      _
    // Predicated region
    $region62: #{tpu_custom_call.1} parent=1 // pred_check
      _
    $region63: #{tpu_custom_call.1} parent=1 // pred_check_branch
      %61 = sbr.rel (0) target = $region65
    $region64: #{tpu_custom_call.1} parent=1 // pred_region
      _
    $region65: #{tpu_custom_call.1} parent=1 // pred_fallthru
      _
    // Predicated region
    $region66: #{tpu_custom_call.1} parent=1 // pred_check
      _
    $region67: #{tpu_custom_call.1} parent=1 // pred_check_branch
      %63 = sbr.rel (0) target = $region69
    $region68: #{tpu_custom_call.1} parent=1 // pred_region
      _
    $region69: #{tpu_custom_call.1} parent=1 // pred_fallthru
      _
    // Predicated region
    $region70: #{tpu_custom_call.1} parent=1 // pred_check
      _
    $region71: #{tpu_custom_call.1} parent=1 // pred_check_branch
      %65 = sbr.rel (0) target = $region73
    $region72: #{tpu_custom_call.1} parent=1 // pred_region
      _
    $region73: #{tpu_custom_call.1} parent=1 // pred_fallthru
      _
    // Predicated region
    $region74: #{tpu_custom_call.1} parent=1 // pred_check
      _
    $region75: #{tpu_custom_call.1} parent=1 // pred_check_branch
      %67 = sbr.rel (0) target = $region77
    $region76: #{tpu_custom_call.1} parent=1 // pred_region
      _
    $region77: #{tpu_custom_call.1} parent=1 // pred_fallthru
      _
    // Predicated region
    $region78: #{tpu_custom_call.1} parent=1 // pred_check
      _
    $region79: #{tpu_custom_call.1} parent=1 // pred_check_branch
      %69 = sbr.rel (0) target = $region81
    $region80: #{tpu_custom_call.1} parent=1 // pred_region
      _
    $region81: #{tpu_custom_call.1} parent=1 // pred_fallthru
      _
    // Predicated region
    $region82: #{tpu_custom_call.1} parent=1 // pred_check
      _
    $region83: #{tpu_custom_call.1} parent=1 // pred_check_branch
      %71 = sbr.rel (0) target = $region85
    $region84: #{tpu_custom_call.1} parent=1 // pred_region
      _
    $region85: #{tpu_custom_call.1} parent=1 // pred_fallthru
      _
    // Predicated region
    $region86: #{tpu_custom_call.1} parent=1 // pred_check
      _
    $region87: #{tpu_custom_call.1} parent=1 // pred_check_branch
      %73 = sbr.rel (0) target = $region89
    $region88: #{tpu_custom_call.1} parent=1 // pred_region
      _
    $region89: #{tpu_custom_call.1} parent=1 // pred_fallthru
      _
    %v75 = vld [vmem:[%s1] sm:$0x3]
    %v76 = vld [vmem:[%s0] sm:$0xff]
    %v77 = vld [vmem:[%s0 + $0x8] sm:$0xff]
    %v78 = vld [vmem:[%s0 + $0x10] sm:$0xff]
    %v79 = vld [vmem:[%s0 + $0x18] sm:$0xff]
    %v84 = vunpack.c.l.b16 %v76
    %v85 = vunpack.c.h.b16 %v76
    %v86 = vunpack.c.l.b16 %v77
    %v87 = vunpack.c.h.b16 %v77
    %v88 = vunpack.c.l.b16 %v78
    %v89 = vunpack.c.h.b16 %v78
    %v90 = vunpack.c.l.b16 %v79
    %v91 = vunpack.c.h.b16 %v79
    %v92 = vpack.c.b16 %v88, %v84
    %v93 = vpack.c.b16 %v89, %v85
    %v94 = vpack.c.b16 %v90, %v86
    %v95 = vpack.c.b16 %v91, %v87
    %vm100 = vcmask 130048
    %v102 = vsel %vm100, %v75, 0
    %104 = vmatpush.bf16.msra.mxu0 0
    %105 = vmatpush.bf16.msra.mxu0 0
    %106 = vmatpush.bf16.msra.mxu0 0
    %107 = vmatpush.bf16.msra.mxu0 0
    %108 = vmatpush.bf16.msra.mxu0 0
    %109 = vmatpush.bf16.msra.mxu0 0
    %110 = vmatpush.bf16.msra.mxu0 0
    %111 = vmatpush.bf16.msra.mxu0 %v92
    %112 = vmatmul.bf16.gmra.mxu0 %v102
    %v113 = vpop.f32.mrf.mxu0
    %v114 = vadd.f32 0.0, %v113
    %v115 = vpop.f32.mrf.mxu0
    %116 = vdwg.mxu0
    %117 = vmatpush.bf16.msra.mxu0 0
    %118 = vmatpush.bf16.msra.mxu0 0
    %119 = vmatpush.bf16.msra.mxu0 0
    %120 = vmatpush.bf16.msra.mxu0 0
    %121 = vmatpush.bf16.msra.mxu0 0
    %122 = vmatpush.bf16.msra.mxu0 0
    %123 = vmatpush.bf16.msra.mxu0 0
    %124 = vmatpush.bf16.msra.mxu0 %v93
    %125 = vmatmul.bf16.gmra.mxu0 %v102
    %v126 = vpop.f32.mrf.mxu0
    %v127 = vadd.f32 0.0, %v126
    %v128 = vpop.f32.mrf.mxu0
    %129 = vdwg.mxu0
    %130 = vmatpush.bf16.msra.mxu0 0
    %131 = vmatpush.bf16.msra.mxu0 0
    %132 = vmatpush.bf16.msra.mxu0 0
    %133 = vmatpush.bf16.msra.mxu0 0
    %134 = vmatpush.bf16.msra.mxu0 0
    %135 = vmatpush.bf16.msra.mxu0 0
    %136 = vmatpush.bf16.msra.mxu0 0
    %137 = vmatpush.bf16.msra.mxu0 %v94
    %138 = vmatmul.bf16.gmra.mxu0 %v102
    %v139 = vpop.f32.mrf.mxu0
    %v140 = vadd.f32 0.0, %v139
    %v141 = vpop.f32.mrf.mxu0
    %142 = vdwg.mxu0
    %143 = vmatpush.bf16.msra.mxu0 0
    %144 = vmatpush.bf16.msra.mxu0 0
    %145 = vmatpush.bf16.msra.mxu0 0
    %146 = vmatpush.bf16.msra.mxu0 0
    %147 = vmatpush.bf16.msra.mxu0 0
    %148 = vmatpush.bf16.msra.mxu0 0
    %149 = vmatpush.bf16.msra.mxu0 0
    %150 = vmatpush.bf16.msra.mxu0 %v95
    %151 = vmatmul.bf16.gmra.mxu0 %v102
    %v152 = vpop.f32.mrf.mxu0
    %v153 = vadd.f32 0.0, %v152
    %v154 = vpop.f32.mrf.mxu0
    %155 = vdwg.mxu0
    %v156 = vld [vmem:[%s2] sm:$0xf]
    %v157 = vld [vmem:[%s3] sm:$0xf]
    %vm158 = vcmask 1043456
    %v159 = vsel %vm158, %v114, 0.0
    %v160 = vsel %vm158, %v127, 0.0
    %v161 = vadd.f32 %v159, %v160
    %v162 = vsel %vm158, %v140, 0.0
    %v163 = vadd.f32 %v161, %v162
    %v164 = vsel %vm158, %v153, 0.0
    %v165 = vadd.f32 %v163, %v164
    %166 = vadd.xlane.f32.xlu0 %v165
    %v167 = vpop.xlane.xlu0 %166
    %v168 = vmul.f32 %v167, 0.001953125
    %v169 = vmul.f32 %v114, %v114
    %v170 = vmul.f32 %v127, %v127
    %v171 = vmul.f32 %v140, %v140
    %v172 = vmul.f32 %v153, %v153
    %v173 = vsel %vm158, %v169, 0.0
    %v174 = vsel %vm158, %v170, 0.0
    %v175 = vadd.f32 %v173, %v174
    %v176 = vsel %vm158, %v171, 0.0
    %v177 = vadd.f32 %v175, %v176
    %v178 = vsel %vm158, %v172, 0.0
    %v179 = vadd.f32 %v177, %v178
    %180 = vadd.xlane.f32.xlu0 %v179
    %v181 = vpop.xlane.xlu0 %180
    %v182 = vmul.f32 %v181, 0.001953125
    %v183 = vmul.f32 %v168, %v168
    %v184 = vsub.f32 %v182, %v183
    %v185 = vmax.f32 %v184, 0.0
    %v186 = vadd.f32 %v185, 1e-05
    %v187 = vrsqrt.pop %v186
    %v188 = vmul.f32 %v187, %v186
    %v189 = vmul.f32 %v188, %v187
    %v190 = vmul.f32 0.5, %v189
    %v191 = vsub.f32 1.5, %v190
    %v192 = vmul.f32 %v187, %v191
    %vm193 = vweird.f32 %v186
    %vm194 = vweird.f32 %v187
    %vm195 = vmor %vm193, %vm194
    %v196 = vsel %vm195, %v187, %v192
    %v197 = vmul.f32 %v156, %v196
    %v198 = vmul.f32 %v168, %v197
    %v199 = vsub.f32 %v157, %v198
    %201 = vset.pattern.permute.xlu0 0
    %202 = vperm.xlu0 %201, %v197
    %v203 = vpop.permute.xlu0 %202
    %v205 = vmul.f32 %v114, %v203
    %v206 = vmul.f32 %v127, %v203
    %v207 = vmul.f32 %v140, %v203
    %v208 = vmul.f32 %v153, %v203
    %210 = vset.pattern.permute.xlu0 0
    %211 = vperm.xlu0 %210, %v199
    %v212 = vpop.permute.xlu0 %211
    %v214 = vadd.f32 %v205, %v212
    %v215 = vadd.f32 %v206, %v212
    %v216 = vadd.f32 %v207, %v212
    %v217 = vadd.f32 %v208, %v212
    %v218 = vmax.f32 %v214, 0.0
    %v219 = vmax.f32 %v215, 0.0
    %v220 = vmax.f32 %v216, 0.0
    %v221 = vmax.f32 %v217, 0.0
    %v222 = vld [vmem:[%s4] sm:$0x3f]
    %v223 = vld [vmem:[%s4 + $0x8] sm:$0x3f]
    %v224 = vld [vmem:[%s4 + $0x10] sm:$0x3f]
    %v225 = vld [vmem:[%s4 + $0x18] sm:$0x3f]
    %226 = vrot.lane.b32.xlu0 %v218, 1
    %v227 = vpop.permute.xlu0 %226
    %228 = vrot.lane.b32.xlu0 %v219, 1
    %v229 = vpop.permute.xlu0 %228
    %230 = vrot.lane.b32.xlu0 %v220, 1
    %v231 = vpop.permute.xlu0 %230
    %232 = vrot.lane.b32.xlu0 %v221, 1
    %v233 = vpop.permute.xlu0 %232
    %v234 = vlaneseq
    %v235 = vand.u32 %v234, 127
    %vm236 = vcmp.lt.s32.totalorder %v235, 1
    %v237 = vsel %vm236, %v231, %v233
    %v238 = vsel %vm236, %v229, %v231
    %v239 = vsel %vm236, %v227, %v229
    %v240 = vsel %vm236, %v233, %v227
    %v241 = vperm.slane %v222, 0
    %v242 = vperm.slane %v223, 0
    %v243 = vperm.slane %v224, 0
    %v244 = vperm.slane %v225, 0
    %v245 = vmul.f32 %v241, %v240
    %v246 = vmul.f32 %v242, %v239
    %v247 = vmul.f32 %v243, %v238
    %v248 = vmul.f32 %v244, %v237
    %249 = vrot.lane.b32.xlu0 %v218, 127
    %v250 = vpop.permute.xlu0 %249
    %251 = vrot.lane.b32.xlu0 %v219, 127
    %v252 = vpop.permute.xlu0 %251
    %253 = vrot.lane.b32.xlu0 %v220, 127
    %v254 = vpop.permute.xlu0 %253
    %255 = vrot.lane.b32.xlu0 %v221, 127
    %v256 = vpop.permute.xlu0 %255
    %vm257 = vcmp.lt.s32.totalorder %v235, 127
    %v258 = vsel %vm257, %v254, %v256
    %v259 = vsel %vm257, %v252, %v254
    %v260 = vsel %vm257, %v250, %v252
    %v261 = vsel %vm257, %v256, %v250
    %v262 = vperm.slane %v222, 1
    %v263 = vperm.slane %v223, 1
    %v264 = vperm.slane %v224, 1
    %v265 = vperm.slane %v225, 1
    %v266 = vmul.f32 %v262, %v260
    %v267 = vmul.f32 %v263, %v259
    %v268 = vmul.f32 %v264, %v258
    %v269 = vmul.f32 %v265, %v261
    %v270 = vadd.f32 %v245, %v266
    %v271 = vadd.f32 %v246, %v267
    %v272 = vadd.f32 %v247, %v268
    %v273 = vadd.f32 %v248, %v269
    %v274 = vperm.slane %v222, 2
    %v275 = vperm.slane %v223, 2
    %v276 = vperm.slane %v224, 2
    %v277 = vperm.slane %v225, 2
    %v278 = vmul.f32 %v274, %v218
    %v279 = vmul.f32 %v275, %v219
    %v280 = vmul.f32 %v276, %v220
    %v281 = vmul.f32 %v277, %v221
    %v282 = vadd.f32 %v270, %v278
    %v283 = vadd.f32 %v271, %v279
    %v284 = vadd.f32 %v272, %v280
    %v285 = vadd.f32 %v273, %v281
    %v286 = vmul.f32 %v218, 0.75
    %v287 = vmul.f32 %v219, 0.75
    %v288 = vmul.f32 %v220, 0.75
    %v289 = vmul.f32 %v221, 0.75
    %v290 = vmul.f32 %v282, 0.25
    %v291 = vmul.f32 %v283, 0.25
    %v292 = vmul.f32 %v284, 0.25
    %v293 = vmul.f32 %v285, 0.25
    %v294 = vadd.f32 %v286, %v290
    %v295 = vadd.f32 %v287, %v291
    %v296 = vadd.f32 %v288, %v292
    %v297 = vadd.f32 %v289, %v293
    %298 = vrot.lane.b32.xlu0 %v294, 16
    %v299 = vpop.permute.xlu0 %298
    %300 = vrot.lane.b32.xlu0 %v295, 16
    %v301 = vpop.permute.xlu0 %300
    %302 = vrot.lane.b32.xlu0 %v296, 16
    %v303 = vpop.permute.xlu0 %302
    %304 = vrot.lane.b32.xlu0 %v297, 16
    %v305 = vpop.permute.xlu0 %304
    %vm306 = vcmp.lt.s32.totalorder %v235, 16
    %v307 = vsel %vm306, %v303, %v305
    %v308 = vsel %vm306, %v301, %v303
    %v309 = vsel %vm306, %v299, %v301
    %v310 = vsel %vm306, %v305, %v299
    %v311 = vperm.slane %v222, 3
    %v312 = vperm.slane %v223, 3
    %v313 = vperm.slane %v224, 3
    %v314 = vperm.slane %v225, 3
    %v315 = vmul.f32 %v311, %v310
    %v316 = vmul.f32 %v312, %v309
    %v317 = vmul.f32 %v313, %v308
    %v318 = vmul.f32 %v314, %v307
    %319 = vrot.lane.b32.xlu0 %v294, 112
    %v320 = vpop.permute.xlu0 %319
    %321 = vrot.lane.b32.xlu0 %v295, 112
    %v322 = vpop.permute.xlu0 %321
    %323 = vrot.lane.b32.xlu0 %v296, 112
    %v324 = vpop.permute.xlu0 %323
    %325 = vrot.lane.b32.xlu0 %v297, 112
    %v326 = vpop.permute.xlu0 %325
    %vm327 = vcmp.lt.s32.totalorder %v235, 112
    %v328 = vsel %vm327, %v324, %v326
    %v329 = vsel %vm327, %v322, %v324
    %v330 = vsel %vm327, %v320, %v322
    %v331 = vsel %vm327, %v326, %v320
    %v332 = vperm.slane %v222, 4
    %v333 = vperm.slane %v223, 4
    %v334 = vperm.slane %v224, 4
    %v335 = vperm.slane %v225, 4
    %v336 = vmul.f32 %v332, %v330
    %v337 = vmul.f32 %v333, %v329
    %v338 = vmul.f32 %v334, %v328
    %v339 = vmul.f32 %v335, %v331
    %v340 = vadd.f32 %v315, %v336
    %v341 = vadd.f32 %v316, %v337
    %v342 = vadd.f32 %v317, %v338
    %v343 = vadd.f32 %v318, %v339
    %v344 = vperm.slane %v222, 5
    %v345 = vperm.slane %v223, 5
    %v346 = vperm.slane %v224, 5
    %v347 = vperm.slane %v225, 5
    %v348 = vmul.f32 %v344, %v294
    %v349 = vmul.f32 %v345, %v295
    %v350 = vmul.f32 %v346, %v296
    %v351 = vmul.f32 %v347, %v297
    %v352 = vadd.f32 %v340, %v348
    %v353 = vadd.f32 %v341, %v349
    %v354 = vadd.f32 %v342, %v350
    %v355 = vadd.f32 %v343, %v351
    %v356 = vmul.f32 %v294, 0.75
    %v357 = vmul.f32 %v295, 0.75
    %v358 = vmul.f32 %v296, 0.75
    %v359 = vmul.f32 %v297, 0.75
    %v360 = vmul.f32 %v352, 0.25
    %v361 = vmul.f32 %v353, 0.25
    %v362 = vmul.f32 %v354, 0.25
    %v363 = vmul.f32 %v355, 0.25
    %v364 = vadd.f32 %v356, %v360
    %v365 = vadd.f32 %v357, %v361
    %v366 = vadd.f32 %v358, %v362
    %v367 = vadd.f32 %v359, %v363
    %v368 = vld [vmem:[%s6] sm:$0xff]
    %v369 = vld [vmem:[%s6 + $0x8] sm:$0xff]
    %v370 = vld [vmem:[%s6 + $0x10] sm:$0xff]
    %v371 = vld [vmem:[%s6 + $0x18] sm:$0xff]
    %v372 = vld [vmem:[%s6 + $0x20] sm:$0x1]
    %v373 = vld [vmem:[%s6 + $0x28] sm:$0x1]
    %v374 = vld [vmem:[%s6 + $0x30] sm:$0x1]
    %v375 = vld [vmem:[%s6 + $0x38] sm:$0x1]
    %376 = vrot.lane.b32.xlu0 %v364, 17
    %v377 = vpop.permute.xlu0 %376
    %378 = vrot.lane.b32.xlu0 %v365, 17
    %v379 = vpop.permute.xlu0 %378
    %380 = vrot.lane.b32.xlu0 %v366, 17
    %v381 = vpop.permute.xlu0 %380
    %382 = vrot.lane.b32.xlu0 %v367, 17
    %v383 = vpop.permute.xlu0 %382
    %vm384 = vcmp.lt.s32.totalorder %v235, 17
    %v385 = vsel %vm384, %v381, %v383
    %v386 = vsel %vm384, %v379, %v381
    %v387 = vsel %vm384, %v377, %v379
    %v388 = vsel %vm384, %v383, %v377
    %v389 = vperm.slane %v368, 0
    %v390 = vperm.slane %v369, 0
    %v391 = vperm.slane %v370, 0
    %v392 = vperm.slane %v371, 0
    %v393 = vmul.f32 %v388, %v389
    %v394 = vmul.f32 %v387, %v390
    %v395 = vmul.f32 %v386, %v391
    %v396 = vmul.f32 %v385, %v392
    %v397 = vpack.c.bf16 %v393, %v393
    %v398 = vpack.c.bf16 %v394, %v394
    %v399 = vpack.c.bf16 %v395, %v395
    %v400 = vpack.c.bf16 %v396, %v396
    %v401 = vld [vmem:[%s5] sm:$0x3]
    %402 = vrot.lane.b32.xlu0 %v364, 16
    %v403 = vpop.permute.xlu0 %402
    %404 = vrot.lane.b32.xlu0 %v365, 16
    %v405 = vpop.permute.xlu0 %404
    %406 = vrot.lane.b32.xlu0 %v366, 16
    %v407 = vpop.permute.xlu0 %406
    %408 = vrot.lane.b32.xlu0 %v367, 16
    %v409 = vpop.permute.xlu0 %408
    %v410 = vsel %vm306, %v407, %v409
    %v411 = vsel %vm306, %v405, %v407
    %v412 = vsel %vm306, %v403, %v405
    %v413 = vsel %vm306, %v409, %v403
    %v414 = vperm.slane %v368, 1
    %v415 = vperm.slane %v369, 1
    %v416 = vperm.slane %v370, 1
    %v417 = vperm.slane %v371, 1
    %v418 = vmul.f32 %v413, %v414
    %v419 = vmul.f32 %v412, %v415
    %v420 = vmul.f32 %v411, %v416
    %v421 = vmul.f32 %v410, %v417
    %v422 = vpack.c.bf16 %v418, %v418
    %v423 = vpack.c.bf16 %v419, %v419
    %v424 = vpack.c.bf16 %v420, %v420
    %v425 = vpack.c.bf16 %v421, %v421
    %s426 = scalar_lea.vmem %s5, 2
    %v427 = vld [vmem:[%s426] sm:$0x3]
    %vm428 = vcmask 31744
    %v430 = vsel %vm428, %v427, 0
    %vm432 = vcmask 1041408
    %v434 = vsel %vm432, %v422, 0
    %v437 = vsel %vm432, %v423, 0
    %v440 = vsel %vm432, %v424, 0
    %v443 = vsel %vm432, %v425, 0
    %445 = vmatpush.bf16.msra.mxu0 0
    %446 = vmatpush.bf16.msra.mxu0 0
    %447 = vmatpush.bf16.msra.mxu0 0
    %448 = vmatpush.bf16.msra.mxu0 0
    %449 = vmatpush.bf16.msra.mxu0 0
    %450 = vmatpush.bf16.msra.mxu0 0
    %451 = vmatpush.bf16.msra.mxu0 0
    %452 = vmatpush.bf16.msra.mxu0 %v434
    %453 = vmatmul.bf16.gmra.mxu0 %v430
    %v454 = vpop.f32.mrf.mxu0
    %v455 = vadd.f32 0.0, %v454
    %v456 = vpop.f32.mrf.mxu0
    %457 = vdwg.mxu0
    %458 = vmatpush.bf16.msra.mxu0 0
    %459 = vmatpush.bf16.msra.mxu0 0
    %460 = vmatpush.bf16.msra.mxu0 0
    %461 = vmatpush.bf16.msra.mxu0 0
    %462 = vmatpush.bf16.msra.mxu0 0
    %463 = vmatpush.bf16.msra.mxu0 0
    %464 = vmatpush.bf16.msra.mxu0 0
    %465 = vmatpush.bf16.msra.mxu0 %v437
    %466 = vmatmul.bf16.gmra.mxu0 %v430
    %v467 = vpop.f32.mrf.mxu0
    %v468 = vadd.f32 0.0, %v467
    %v469 = vpop.f32.mrf.mxu0
    %470 = vdwg.mxu0
    %471 = vmatpush.bf16.msra.mxu0 0
    %472 = vmatpush.bf16.msra.mxu0 0
    %473 = vmatpush.bf16.msra.mxu0 0
    %474 = vmatpush.bf16.msra.mxu0 0
    %475 = vmatpush.bf16.msra.mxu0 0
    %476 = vmatpush.bf16.msra.mxu0 0
    %477 = vmatpush.bf16.msra.mxu0 0
    %478 = vmatpush.bf16.msra.mxu0 %v440
    %479 = vmatmul.bf16.gmra.mxu0 %v430
    %v480 = vpop.f32.mrf.mxu0
    %v481 = vadd.f32 0.0, %v480
    %v482 = vpop.f32.mrf.mxu0
    %483 = vdwg.mxu0
    %484 = vmatpush.bf16.msra.mxu0 0
    %485 = vmatpush.bf16.msra.mxu0 0
    %486 = vmatpush.bf16.msra.mxu0 0
    %487 = vmatpush.bf16.msra.mxu0 0
    %488 = vmatpush.bf16.msra.mxu0 0
    %489 = vmatpush.bf16.msra.mxu0 0
    %490 = vmatpush.bf16.msra.mxu0 0
    %491 = vmatpush.bf16.msra.mxu0 %v443
    %492 = vmatmul.bf16.gmra.mxu0 %v430
    %v493 = vpop.f32.mrf.mxu0
    %v494 = vadd.f32 0.0, %v493
    %v495 = vpop.f32.mrf.mxu0
    %496 = vdwg.mxu0
    %v498 = vsel %vm428, %v401, 0
    %v501 = vsel %vm432, %v397, 0
    %v504 = vsel %vm432, %v398, 0
    %v507 = vsel %vm432, %v399, 0
    %v510 = vsel %vm432, %v400, 0
    %512 = vmatpush.bf16.msra.mxu0 0
    %513 = vmatpush.bf16.msra.mxu0 0
    %514 = vmatpush.bf16.msra.mxu0 0
    %515 = vmatpush.bf16.msra.mxu0 0
    %516 = vmatpush.bf16.msra.mxu0 0
    %517 = vmatpush.bf16.msra.mxu0 0
    %518 = vmatpush.bf16.msra.mxu0 0
    %519 = vmatpush.bf16.msra.mxu0 %v501
    %520 = vmatmul.bf16.gmra.mxu0 %v498
    %v521 = vpop.f32.mrf.mxu0
    %v522 = vadd.f32 %v455, %v521
    %v523 = vpop.f32.mrf.mxu0
    %524 = vdwg.mxu0
    %525 = vmatpush.bf16.msra.mxu0 0
    %526 = vmatpush.bf16.msra.mxu0 0
    %527 = vmatpush.bf16.msra.mxu0 0
    %528 = vmatpush.bf16.msra.mxu0 0
    %529 = vmatpush.bf16.msra.mxu0 0
    %530 = vmatpush.bf16.msra.mxu0 0
    %531 = vmatpush.bf16.msra.mxu0 0
    %532 = vmatpush.bf16.msra.mxu0 %v504
    %533 = vmatmul.bf16.gmra.mxu0 %v498
    %v534 = vpop.f32.mrf.mxu0
    %v535 = vadd.f32 %v468, %v534
    %v536 = vpop.f32.mrf.mxu0
    %537 = vdwg.mxu0
    %538 = vmatpush.bf16.msra.mxu0 0
    %539 = vmatpush.bf16.msra.mxu0 0
    %540 = vmatpush.bf16.msra.mxu0 0
    %541 = vmatpush.bf16.msra.mxu0 0
    %542 = vmatpush.bf16.msra.mxu0 0
    %543 = vmatpush.bf16.msra.mxu0 0
    %544 = vmatpush.bf16.msra.mxu0 0
    %545 = vmatpush.bf16.msra.mxu0 %v507
    %546 = vmatmul.bf16.gmra.mxu0 %v498
    %v547 = vpop.f32.mrf.mxu0
    %v548 = vadd.f32 %v481, %v547
    %v549 = vpop.f32.mrf.mxu0
    %550 = vdwg.mxu0
    %551 = vmatpush.bf16.msra.mxu0 0
    %552 = vmatpush.bf16.msra.mxu0 0
    %553 = vmatpush.bf16.msra.mxu0 0
    %554 = vmatpush.bf16.msra.mxu0 0
    %555 = vmatpush.bf16.msra.mxu0 0
    %556 = vmatpush.bf16.msra.mxu0 0
    %557 = vmatpush.bf16.msra.mxu0 0
    %558 = vmatpush.bf16.msra.mxu0 %v510
    %559 = vmatmul.bf16.gmra.mxu0 %v498
    %v560 = vpop.f32.mrf.mxu0
    %v561 = vadd.f32 %v494, %v560
    %v562 = vpop.f32.mrf.mxu0
    %563 = vdwg.mxu0
    %564 = vrot.lane.b32.xlu0 %v364, 15
    %v565 = vpop.permute.xlu0 %564
    %566 = vrot.lane.b32.xlu0 %v365, 15
    %v567 = vpop.permute.xlu0 %566
    %568 = vrot.lane.b32.xlu0 %v366, 15
    %v569 = vpop.permute.xlu0 %568
    %570 = vrot.lane.b32.xlu0 %v367, 15
    %v571 = vpop.permute.xlu0 %570
    %vm572 = vcmp.lt.s32.totalorder %v235, 15
    %v573 = vsel %vm572, %v569, %v571
    %v574 = vsel %vm572, %v567, %v569
    %v575 = vsel %vm572, %v565, %v567
    %v576 = vsel %vm572, %v571, %v565
    %v577 = vperm.slane %v368, 2
    %v578 = vperm.slane %v369, 2
    %v579 = vperm.slane %v370, 2
    %v580 = vperm.slane %v371, 2
    %v581 = vmul.f32 %v576, %v577
    %v582 = vmul.f32 %v575, %v578
    %v583 = vmul.f32 %v574, %v579
    %v584 = vmul.f32 %v573, %v580
    %v585 = vpack.c.bf16 %v581, %v581
    %v586 = vpack.c.bf16 %v582, %v582
    %v587 = vpack.c.bf16 %v583, %v583
    %v588 = vpack.c.bf16 %v584, %v584
    %s589 = scalar_lea.vmem %s5, 4
    %v590 = vld [vmem:[%s589] sm:$0x3]
    %v592 = vsel %vm428, %v590, 0
    %v595 = vsel %vm432, %v585, 0
    %v598 = vsel %vm432, %v586, 0
    %v601 = vsel %vm432, %v587, 0
    %v604 = vsel %vm432, %v588, 0
    %606 = vmatpush.bf16.msra.mxu0 0
    %607 = vmatpush.bf16.msra.mxu0 0
    %608 = vmatpush.bf16.msra.mxu0 0
    %609 = vmatpush.bf16.msra.mxu0 0
    %610 = vmatpush.bf16.msra.mxu0 0
    %611 = vmatpush.bf16.msra.mxu0 0
    %612 = vmatpush.bf16.msra.mxu0 0
    %613 = vmatpush.bf16.msra.mxu0 %v595
    %614 = vmatmul.bf16.gmra.mxu0 %v592
    %v615 = vpop.f32.mrf.mxu0
    %v616 = vadd.f32 0.0, %v615
    %v617 = vpop.f32.mrf.mxu0
    %618 = vdwg.mxu0
    %619 = vmatpush.bf16.msra.mxu0 0
    %620 = vmatpush.bf16.msra.mxu0 0
    %621 = vmatpush.bf16.msra.mxu0 0
    %622 = vmatpush.bf16.msra.mxu0 0
    %623 = vmatpush.bf16.msra.mxu0 0
    %624 = vmatpush.bf16.msra.mxu0 0
    %625 = vmatpush.bf16.msra.mxu0 0
    %626 = vmatpush.bf16.msra.mxu0 %v598
    %627 = vmatmul.bf16.gmra.mxu0 %v592
    %v628 = vpop.f32.mrf.mxu0
    %v629 = vadd.f32 0.0, %v628
    %v630 = vpop.f32.mrf.mxu0
    %631 = vdwg.mxu0
    %632 = vmatpush.bf16.msra.mxu0 0
    %633 = vmatpush.bf16.msra.mxu0 0
    %634 = vmatpush.bf16.msra.mxu0 0
    %635 = vmatpush.bf16.msra.mxu0 0
    %636 = vmatpush.bf16.msra.mxu0 0
    %637 = vmatpush.bf16.msra.mxu0 0
    %638 = vmatpush.bf16.msra.mxu0 0
    %639 = vmatpush.bf16.msra.mxu0 %v601
    %640 = vmatmul.bf16.gmra.mxu0 %v592
    %v641 = vpop.f32.mrf.mxu0
    %v642 = vadd.f32 0.0, %v641
    %v643 = vpop.f32.mrf.mxu0
    %644 = vdwg.mxu0
    %645 = vmatpush.bf16.msra.mxu0 0
    %646 = vmatpush.bf16.msra.mxu0 0
    %647 = vmatpush.bf16.msra.mxu0 0
    %648 = vmatpush.bf16.msra.mxu0 0
    %649 = vmatpush.bf16.msra.mxu0 0
    %650 = vmatpush.bf16.msra.mxu0 0
    %651 = vmatpush.bf16.msra.mxu0 0
    %652 = vmatpush.bf16.msra.mxu0 %v604
    %653 = vmatmul.bf16.gmra.mxu0 %v592
    %v654 = vpop.f32.mrf.mxu0
    %v655 = vadd.f32 0.0, %v654
    %v656 = vpop.f32.mrf.mxu0
    %657 = vdwg.mxu0
    %v658 = vadd.f32 %v522, %v616
    %v659 = vadd.f32 %v535, %v629
    %v660 = vadd.f32 %v548, %v642
    %v661 = vadd.f32 %v561, %v655
    %662 = vrot.lane.b32.xlu0 %v364, 1
    %v663 = vpop.permute.xlu0 %662
    %664 = vrot.lane.b32.xlu0 %v365, 1
    %v665 = vpop.permute.xlu0 %664
    %666 = vrot.lane.b32.xlu0 %v366, 1
    %v667 = vpop.permute.xlu0 %666
    %668 = vrot.lane.b32.xlu0 %v367, 1
    %v669 = vpop.permute.xlu0 %668
    %v670 = vsel %vm236, %v667, %v669
    %v671 = vsel %vm236, %v665, %v667
    %v672 = vsel %vm236, %v663, %v665
    %v673 = vsel %vm236, %v669, %v663
    %v674 = vperm.slane %v368, 3
    %v675 = vperm.slane %v369, 3
    %v676 = vperm.slane %v370, 3
    %v677 = vperm.slane %v371, 3
    %v678 = vmul.f32 %v673, %v674
    %v679 = vmul.f32 %v672, %v675
    %v680 = vmul.f32 %v671, %v676
    %v681 = vmul.f32 %v670, %v677
    %v682 = vpack.c.bf16 %v678, %v678
    %v683 = vpack.c.bf16 %v679, %v679
    %v684 = vpack.c.bf16 %v680, %v680
    %v685 = vpack.c.bf16 %v681, %v681
    %s686 = scalar_lea.vmem %s5, 6
    %v687 = vld [vmem:[%s686] sm:$0x3]
    %v689 = vsel %vm428, %v687, 0
    %v692 = vsel %vm432, %v682, 0
    %v695 = vsel %vm432, %v683, 0
    %v698 = vsel %vm432, %v684, 0
    %v701 = vsel %vm432, %v685, 0
    %703 = vmatpush.bf16.msra.mxu0 0
    %704 = vmatpush.bf16.msra.mxu0 0
    %705 = vmatpush.bf16.msra.mxu0 0
    %706 = vmatpush.bf16.msra.mxu0 0
    %707 = vmatpush.bf16.msra.mxu0 0
    %708 = vmatpush.bf16.msra.mxu0 0
    %709 = vmatpush.bf16.msra.mxu0 0
    %710 = vmatpush.bf16.msra.mxu0 %v692
    %711 = vmatmul.bf16.gmra.mxu0 %v689
    %v712 = vpop.f32.mrf.mxu0
    %v713 = vadd.f32 0.0, %v712
    %v714 = vpop.f32.mrf.mxu0
    %715 = vdwg.mxu0
    %716 = vmatpush.bf16.msra.mxu0 0
    %717 = vmatpush.bf16.msra.mxu0 0
    %718 = vmatpush.bf16.msra.mxu0 0
    %719 = vmatpush.bf16.msra.mxu0 0
    %720 = vmatpush.bf16.msra.mxu0 0
    %721 = vmatpush.bf16.msra.mxu0 0
    %722 = vmatpush.bf16.msra.mxu0 0
    %723 = vmatpush.bf16.msra.mxu0 %v695
    %724 = vmatmul.bf16.gmra.mxu0 %v689
    %v725 = vpop.f32.mrf.mxu0
    %v726 = vadd.f32 0.0, %v725
    %v727 = vpop.f32.mrf.mxu0
    %728 = vdwg.mxu0
    %729 = vmatpush.bf16.msra.mxu0 0
    %730 = vmatpush.bf16.msra.mxu0 0
    %731 = vmatpush.bf16.msra.mxu0 0
    %732 = vmatpush.bf16.msra.mxu0 0
    %733 = vmatpush.bf16.msra.mxu0 0
    %734 = vmatpush.bf16.msra.mxu0 0
    %735 = vmatpush.bf16.msra.mxu0 0
    %736 = vmatpush.bf16.msra.mxu0 %v698
    %737 = vmatmul.bf16.gmra.mxu0 %v689
    %v738 = vpop.f32.mrf.mxu0
    %v739 = vadd.f32 0.0, %v738
    %v740 = vpop.f32.mrf.mxu0
    %741 = vdwg.mxu0
    %742 = vmatpush.bf16.msra.mxu0 0
    %743 = vmatpush.bf16.msra.mxu0 0
    %744 = vmatpush.bf16.msra.mxu0 0
    %745 = vmatpush.bf16.msra.mxu0 0
    %746 = vmatpush.bf16.msra.mxu0 0
    %747 = vmatpush.bf16.msra.mxu0 0
    %748 = vmatpush.bf16.msra.mxu0 0
    %749 = vmatpush.bf16.msra.mxu0 %v701
    %750 = vmatmul.bf16.gmra.mxu0 %v689
    %v751 = vpop.f32.mrf.mxu0
    %v752 = vadd.f32 0.0, %v751
    %v753 = vpop.f32.mrf.mxu0
    %754 = vdwg.mxu0
    %v755 = vadd.f32 %v658, %v713
    %v756 = vadd.f32 %v659, %v726
    %v757 = vadd.f32 %v660, %v739
    %v758 = vadd.f32 %v661, %v752
    %v759 = vperm.slane %v368, 4
    %v760 = vperm.slane %v369, 4
    %v761 = vperm.slane %v370, 4
    %v762 = vperm.slane %v371, 4
    %v763 = vmul.f32 %v364, %v759
    %v764 = vmul.f32 %v365, %v760
    %v765 = vmul.f32 %v366, %v761
    %v766 = vmul.f32 %v367, %v762
    %v767 = vpack.c.bf16 %v763, %v763
    %v768 = vpack.c.bf16 %v764, %v764
    %v769 = vpack.c.bf16 %v765, %v765
    %v770 = vpack.c.bf16 %v766, %v766
    %s771 = scalar_lea.vmem %s5, 8
    %v772 = vld [vmem:[%s771] sm:$0x3]
    %v774 = vsel %vm428, %v772, 0
    %v777 = vsel %vm432, %v767, 0
    %v780 = vsel %vm432, %v768, 0
    %v783 = vsel %vm432, %v769, 0
    %v786 = vsel %vm432, %v770, 0
    %788 = vmatpush.bf16.msra.mxu0 0
    %789 = vmatpush.bf16.msra.mxu0 0
    %790 = vmatpush.bf16.msra.mxu0 0
    %791 = vmatpush.bf16.msra.mxu0 0
    %792 = vmatpush.bf16.msra.mxu0 0
    %793 = vmatpush.bf16.msra.mxu0 0
    %794 = vmatpush.bf16.msra.mxu0 0
    %795 = vmatpush.bf16.msra.mxu0 %v777
    %796 = vmatmul.bf16.gmra.mxu0 %v774
    %v797 = vpop.f32.mrf.mxu0
    %v798 = vadd.f32 0.0, %v797
    %v799 = vpop.f32.mrf.mxu0
    %800 = vdwg.mxu0
    %801 = vmatpush.bf16.msra.mxu0 0
    %802 = vmatpush.bf16.msra.mxu0 0
    %803 = vmatpush.bf16.msra.mxu0 0
    %804 = vmatpush.bf16.msra.mxu0 0
    %805 = vmatpush.bf16.msra.mxu0 0
    %806 = vmatpush.bf16.msra.mxu0 0
    %807 = vmatpush.bf16.msra.mxu0 0
    %808 = vmatpush.bf16.msra.mxu0 %v780
    %809 = vmatmul.bf16.gmra.mxu0 %v774
    %v810 = vpop.f32.mrf.mxu0
    %v811 = vadd.f32 0.0, %v810
    %v812 = vpop.f32.mrf.mxu0
    %813 = vdwg.mxu0
    %814 = vmatpush.bf16.msra.mxu0 0
    %815 = vmatpush.bf16.msra.mxu0 0
    %816 = vmatpush.bf16.msra.mxu0 0
    %817 = vmatpush.bf16.msra.mxu0 0
    %818 = vmatpush.bf16.msra.mxu0 0
    %819 = vmatpush.bf16.msra.mxu0 0
    %820 = vmatpush.bf16.msra.mxu0 0
    %821 = vmatpush.bf16.msra.mxu0 %v783
    %822 = vmatmul.bf16.gmra.mxu0 %v774
    %v823 = vpop.f32.mrf.mxu0
    %v824 = vadd.f32 0.0, %v823
    %v825 = vpop.f32.mrf.mxu0
    %826 = vdwg.mxu0
    %827 = vmatpush.bf16.msra.mxu0 0
    %828 = vmatpush.bf16.msra.mxu0 0
    %829 = vmatpush.bf16.msra.mxu0 0
    %830 = vmatpush.bf16.msra.mxu0 0
    %831 = vmatpush.bf16.msra.mxu0 0
    %832 = vmatpush.bf16.msra.mxu0 0
    %833 = vmatpush.bf16.msra.mxu0 0
    %834 = vmatpush.bf16.msra.mxu0 %v786
    %835 = vmatmul.bf16.gmra.mxu0 %v774
    %v836 = vpop.f32.mrf.mxu0
    %v837 = vadd.f32 0.0, %v836
    %v838 = vpop.f32.mrf.mxu0
    %839 = vdwg.mxu0
    %v840 = vadd.f32 %v755, %v798
    %v841 = vadd.f32 %v756, %v811
    %v842 = vadd.f32 %v757, %v824
    %v843 = vadd.f32 %v758, %v837
    %844 = vrot.lane.b32.xlu0 %v364, 127
    %v845 = vpop.permute.xlu0 %844
    %846 = vrot.lane.b32.xlu0 %v365, 127
    %v847 = vpop.permute.xlu0 %846
    %848 = vrot.lane.b32.xlu0 %v366, 127
    %v849 = vpop.permute.xlu0 %848
    %850 = vrot.lane.b32.xlu0 %v367, 127
    %v851 = vpop.permute.xlu0 %850
    %v852 = vsel %vm257, %v849, %v851
    %v853 = vsel %vm257, %v847, %v849
    %v854 = vsel %vm257, %v845, %v847
    %v855 = vsel %vm257, %v851, %v845
    %v856 = vperm.slane %v368, 5
    %v857 = vperm.slane %v369, 5
    %v858 = vperm.slane %v370, 5
    %v859 = vperm.slane %v371, 5
    %v860 = vmul.f32 %v854, %v856
    %v861 = vmul.f32 %v853, %v857
    %v862 = vmul.f32 %v852, %v858
    %v863 = vmul.f32 %v855, %v859
    %v864 = vpack.c.bf16 %v860, %v860
    %v865 = vpack.c.bf16 %v861, %v861
    %v866 = vpack.c.bf16 %v862, %v862
    %v867 = vpack.c.bf16 %v863, %v863
    %s868 = scalar_lea.vmem %s5, 10
    %v869 = vld [vmem:[%s868] sm:$0x3]
    %v871 = vsel %vm428, %v869, 0
    %v874 = vsel %vm432, %v864, 0
    %v877 = vsel %vm432, %v865, 0
    %v880 = vsel %vm432, %v866, 0
    %v883 = vsel %vm432, %v867, 0
    %885 = vmatpush.bf16.msra.mxu0 0
    %886 = vmatpush.bf16.msra.mxu0 0
    %887 = vmatpush.bf16.msra.mxu0 0
    %888 = vmatpush.bf16.msra.mxu0 0
    %889 = vmatpush.bf16.msra.mxu0 0
    %890 = vmatpush.bf16.msra.mxu0 0
    %891 = vmatpush.bf16.msra.mxu0 0
    %892 = vmatpush.bf16.msra.mxu0 %v874
    %893 = vmatmul.bf16.gmra.mxu0 %v871
    %v894 = vpop.f32.mrf.mxu0
    %v895 = vadd.f32 0.0, %v894
    %v896 = vpop.f32.mrf.mxu0
    %897 = vdwg.mxu0
    %898 = vmatpush.bf16.msra.mxu0 0
    %899 = vmatpush.bf16.msra.mxu0 0
    %900 = vmatpush.bf16.msra.mxu0 0
    %901 = vmatpush.bf16.msra.mxu0 0
    %902 = vmatpush.bf16.msra.mxu0 0
    %903 = vmatpush.bf16.msra.mxu0 0
    %904 = vmatpush.bf16.msra.mxu0 0
    %905 = vmatpush.bf16.msra.mxu0 %v877
    %906 = vmatmul.bf16.gmra.mxu0 %v871
    %v907 = vpop.f32.mrf.mxu0
    %v908 = vadd.f32 0.0, %v907
    %v909 = vpop.f32.mrf.mxu0
    %910 = vdwg.mxu0
    %911 = vmatpush.bf16.msra.mxu0 0
    %912 = vmatpush.bf16.msra.mxu0 0
    %913 = vmatpush.bf16.msra.mxu0 0
    %914 = vmatpush.bf16.msra.mxu0 0
    %915 = vmatpush.bf16.msra.mxu0 0
    %916 = vmatpush.bf16.msra.mxu0 0
    %917 = vmatpush.bf16.msra.mxu0 0
    %918 = vmatpush.bf16.msra.mxu0 %v880
    %919 = vmatmul.bf16.gmra.mxu0 %v871
    %v920 = vpop.f32.mrf.mxu0
    %v921 = vadd.f32 0.0, %v920
    %v922 = vpop.f32.mrf.mxu0
    %923 = vdwg.mxu0
    %924 = vmatpush.bf16.msra.mxu0 0
    %925 = vmatpush.bf16.msra.mxu0 0
    %926 = vmatpush.bf16.msra.mxu0 0
    %927 = vmatpush.bf16.msra.mxu0 0
    %928 = vmatpush.bf16.msra.mxu0 0
    %929 = vmatpush.bf16.msra.mxu0 0
    %930 = vmatpush.bf16.msra.mxu0 0
    %931 = vmatpush.bf16.msra.mxu0 %v883
    %932 = vmatmul.bf16.gmra.mxu0 %v871
    %v933 = vpop.f32.mrf.mxu0
    %v934 = vadd.f32 0.0, %v933
    %v935 = vpop.f32.mrf.mxu0
    %936 = vdwg.mxu0
    %v937 = vadd.f32 %v840, %v895
    %v938 = vadd.f32 %v841, %v908
    %v939 = vadd.f32 %v842, %v921
    %v940 = vadd.f32 %v843, %v934
    %941 = vrot.lane.b32.xlu0 %v364, 113
    %v942 = vpop.permute.xlu0 %941
    %943 = vrot.lane.b32.xlu0 %v365, 113
    %v944 = vpop.permute.xlu0 %943
    %945 = vrot.lane.b32.xlu0 %v366, 113
    %v946 = vpop.permute.xlu0 %945
    %947 = vrot.lane.b32.xlu0 %v367, 113
    %v948 = vpop.permute.xlu0 %947
    %vm949 = vcmp.lt.s32.totalorder %v235, 113
    %v950 = vsel %vm949, %v946, %v948
    %v951 = vsel %vm949, %v944, %v946
    %v952 = vsel %vm949, %v942, %v944
    %v953 = vsel %vm949, %v948, %v942
    %v954 = vperm.slane %v368, 6
    %v955 = vperm.slane %v369, 6
    %v956 = vperm.slane %v370, 6
    %v957 = vperm.slane %v371, 6
    %v958 = vmul.f32 %v952, %v954
    %v959 = vmul.f32 %v951, %v955
    %v960 = vmul.f32 %v950, %v956
    %v961 = vmul.f32 %v953, %v957
    %v962 = vpack.c.bf16 %v958, %v958
    %v963 = vpack.c.bf16 %v959, %v959
    %v964 = vpack.c.bf16 %v960, %v960
    %v965 = vpack.c.bf16 %v961, %v961
    %s966 = scalar_lea.vmem %s5, 12
    %v967 = vld [vmem:[%s966] sm:$0x3]
    %v969 = vsel %vm428, %v967, 0
    %v972 = vsel %vm432, %v962, 0
    %v975 = vsel %vm432, %v963, 0
    %v978 = vsel %vm432, %v964, 0
    %v981 = vsel %vm432, %v965, 0
    %983 = vmatpush.bf16.msra.mxu0 0
    %984 = vmatpush.bf16.msra.mxu0 0
    %985 = vmatpush.bf16.msra.mxu0 0
    %986 = vmatpush.bf16.msra.mxu0 0
    %987 = vmatpush.bf16.msra.mxu0 0
    %988 = vmatpush.bf16.msra.mxu0 0
    %989 = vmatpush.bf16.msra.mxu0 0
    %990 = vmatpush.bf16.msra.mxu0 %v972
    %991 = vmatmul.bf16.gmra.mxu0 %v969
    %v992 = vpop.f32.mrf.mxu0
    %v993 = vadd.f32 0.0, %v992
    %v994 = vpop.f32.mrf.mxu0
    %995 = vdwg.mxu0
    %996 = vmatpush.bf16.msra.mxu0 0
    %997 = vmatpush.bf16.msra.mxu0 0
    %998 = vmatpush.bf16.msra.mxu0 0
    %999 = vmatpush.bf16.msra.mxu0 0
    %1000 = vmatpush.bf16.msra.mxu0 0
    %1001 = vmatpush.bf16.msra.mxu0 0
    %1002 = vmatpush.bf16.msra.mxu0 0
    %1003 = vmatpush.bf16.msra.mxu0 %v975
    %1004 = vmatmul.bf16.gmra.mxu0 %v969
    %v1005 = vpop.f32.mrf.mxu0
    %v1006 = vadd.f32 0.0, %v1005
    %v1007 = vpop.f32.mrf.mxu0
    %1008 = vdwg.mxu0
    %1009 = vmatpush.bf16.msra.mxu0 0
    %1010 = vmatpush.bf16.msra.mxu0 0
    %1011 = vmatpush.bf16.msra.mxu0 0
    %1012 = vmatpush.bf16.msra.mxu0 0
    %1013 = vmatpush.bf16.msra.mxu0 0
    %1014 = vmatpush.bf16.msra.mxu0 0
    %1015 = vmatpush.bf16.msra.mxu0 0
    %1016 = vmatpush.bf16.msra.mxu0 %v978
    %1017 = vmatmul.bf16.gmra.mxu0 %v969
    %v1018 = vpop.f32.mrf.mxu0
    %v1019 = vadd.f32 0.0, %v1018
    %v1020 = vpop.f32.mrf.mxu0
    %1021 = vdwg.mxu0
    %1022 = vmatpush.bf16.msra.mxu0 0
    %1023 = vmatpush.bf16.msra.mxu0 0
    %1024 = vmatpush.bf16.msra.mxu0 0
    %1025 = vmatpush.bf16.msra.mxu0 0
    %1026 = vmatpush.bf16.msra.mxu0 0
    %1027 = vmatpush.bf16.msra.mxu0 0
    %1028 = vmatpush.bf16.msra.mxu0 0
    %1029 = vmatpush.bf16.msra.mxu0 %v981
    %1030 = vmatmul.bf16.gmra.mxu0 %v969
    %v1031 = vpop.f32.mrf.mxu0
    %v1032 = vadd.f32 0.0, %v1031
    %v1033 = vpop.f32.mrf.mxu0
    %1034 = vdwg.mxu0
    %v1035 = vadd.f32 %v937, %v993
    %v1036 = vadd.f32 %v938, %v1006
    %v1037 = vadd.f32 %v939, %v1019
    %v1038 = vadd.f32 %v940, %v1032
    %1039 = vrot.lane.b32.xlu0 %v364, 112
    %v1040 = vpop.permute.xlu0 %1039
    %1041 = vrot.lane.b32.xlu0 %v365, 112
    %v1042 = vpop.permute.xlu0 %1041
    %1043 = vrot.lane.b32.xlu0 %v366, 112
    %v1044 = vpop.permute.xlu0 %1043
    %1045 = vrot.lane.b32.xlu0 %v367, 112
    %v1046 = vpop.permute.xlu0 %1045
    %v1047 = vsel %vm327, %v1044, %v1046
    %v1048 = vsel %vm327, %v1042, %v1044
    %v1049 = vsel %vm327, %v1040, %v1042
    %v1050 = vsel %vm327, %v1046, %v1040
    %v1051 = vperm.slane %v368, 7
    %v1052 = vperm.slane %v369, 7
    %v1053 = vperm.slane %v370, 7
    %v1054 = vperm.slane %v371, 7
    %v1055 = vmul.f32 %v1049, %v1051
    %v1056 = vmul.f32 %v1048, %v1052
    %v1057 = vmul.f32 %v1047, %v1053
    %v1058 = vmul.f32 %v1050, %v1054
    %v1059 = vpack.c.bf16 %v1055, %v1055
    %v1060 = vpack.c.bf16 %v1056, %v1056
    %v1061 = vpack.c.bf16 %v1057, %v1057
    %v1062 = vpack.c.bf16 %v1058, %v1058
    %s1063 = scalar_lea.vmem %s5, 14
    %v1064 = vld [vmem:[%s1063] sm:$0x3]
    %v1066 = vsel %vm428, %v1064, 0
    %v1069 = vsel %vm432, %v1059, 0
    %v1072 = vsel %vm432, %v1060, 0
    %v1075 = vsel %vm432, %v1061, 0
    %v1078 = vsel %vm432, %v1062, 0
    %1080 = vmatpush.bf16.msra.mxu0 0
    %1081 = vmatpush.bf16.msra.mxu0 0
    %1082 = vmatpush.bf16.msra.mxu0 0
    %1083 = vmatpush.bf16.msra.mxu0 0
    %1084 = vmatpush.bf16.msra.mxu0 0
    %1085 = vmatpush.bf16.msra.mxu0 0
    %1086 = vmatpush.bf16.msra.mxu0 0
    %1087 = vmatpush.bf16.msra.mxu0 %v1069
    %1088 = vmatmul.bf16.gmra.mxu0 %v1066
    %v1089 = vpop.f32.mrf.mxu0
    %v1090 = vadd.f32 0.0, %v1089
    %v1091 = vpop.f32.mrf.mxu0
    %1092 = vdwg.mxu0
    %1093 = vmatpush.bf16.msra.mxu0 0
    %1094 = vmatpush.bf16.msra.mxu0 0
    %1095 = vmatpush.bf16.msra.mxu0 0
    %1096 = vmatpush.bf16.msra.mxu0 0
    %1097 = vmatpush.bf16.msra.mxu0 0
    %1098 = vmatpush.bf16.msra.mxu0 0
    %1099 = vmatpush.bf16.msra.mxu0 0
    %1100 = vmatpush.bf16.msra.mxu0 %v1072
    %1101 = vmatmul.bf16.gmra.mxu0 %v1066
    %v1102 = vpop.f32.mrf.mxu0
    %v1103 = vadd.f32 0.0, %v1102
    %v1104 = vpop.f32.mrf.mxu0
    %1105 = vdwg.mxu0
    %1106 = vmatpush.bf16.msra.mxu0 0
    %1107 = vmatpush.bf16.msra.mxu0 0
    %1108 = vmatpush.bf16.msra.mxu0 0
    %1109 = vmatpush.bf16.msra.mxu0 0
    %1110 = vmatpush.bf16.msra.mxu0 0
    %1111 = vmatpush.bf16.msra.mxu0 0
    %1112 = vmatpush.bf16.msra.mxu0 0
    %1113 = vmatpush.bf16.msra.mxu0 %v1075
    %1114 = vmatmul.bf16.gmra.mxu0 %v1066
    %v1115 = vpop.f32.mrf.mxu0
    %v1116 = vadd.f32 0.0, %v1115
    %v1117 = vpop.f32.mrf.mxu0
    %1118 = vdwg.mxu0
    %1119 = vmatpush.bf16.msra.mxu0 0
    %1120 = vmatpush.bf16.msra.mxu0 0
    %1121 = vmatpush.bf16.msra.mxu0 0
    %1122 = vmatpush.bf16.msra.mxu0 0
    %1123 = vmatpush.bf16.msra.mxu0 0
    %1124 = vmatpush.bf16.msra.mxu0 0
    %1125 = vmatpush.bf16.msra.mxu0 0
    %1126 = vmatpush.bf16.msra.mxu0 %v1078
    %1127 = vmatmul.bf16.gmra.mxu0 %v1066
    %v1128 = vpop.f32.mrf.mxu0
    %v1129 = vadd.f32 0.0, %v1128
    %v1130 = vpop.f32.mrf.mxu0
    %1131 = vdwg.mxu0
    %v1132 = vadd.f32 %v1035, %v1090
    %v1133 = vadd.f32 %v1036, %v1103
    %v1134 = vadd.f32 %v1037, %v1116
    %v1135 = vadd.f32 %v1038, %v1129
    %1136 = vrot.lane.b32.xlu0 %v364, 111
    %v1137 = vpop.permute.xlu0 %1136
    %1138 = vrot.lane.b32.xlu0 %v365, 111
    %v1139 = vpop.permute.xlu0 %1138
    %1140 = vrot.lane.b32.xlu0 %v366, 111
    %v1141 = vpop.permute.xlu0 %1140
    %1142 = vrot.lane.b32.xlu0 %v367, 111
    %v1143 = vpop.permute.xlu0 %1142
    %vm1144 = vcmp.lt.s32.totalorder %v235, 111
    %v1145 = vsel %vm1144, %v1141, %v1143
    %v1146 = vsel %vm1144, %v1139, %v1141
    %v1147 = vsel %vm1144, %v1137, %v1139
    %v1148 = vsel %vm1144, %v1143, %v1137
    %v1149 = vperm.slane %v372, 0
    %v1150 = vperm.slane %v373, 0
    %v1151 = vperm.slane %v374, 0
    %v1152 = vperm.slane %v375, 0
    %v1153 = vmul.f32 %v1147, %v1149
    %v1154 = vmul.f32 %v1146, %v1150
    %v1155 = vmul.f32 %v1145, %v1151
    %v1156 = vmul.f32 %v1148, %v1152
    %v1157 = vpack.c.bf16 %v1153, %v1153
    %v1158 = vpack.c.bf16 %v1154, %v1154
    %v1159 = vpack.c.bf16 %v1155, %v1155
    %v1160 = vpack.c.bf16 %v1156, %v1156
    %s1161 = scalar_lea.vmem %s5, 16
    %v1162 = vld [vmem:[%s1161] sm:$0x3]
    %v1164 = vsel %vm428, %v1162, 0
    %v1167 = vsel %vm432, %v1157, 0
    %v1170 = vsel %vm432, %v1158, 0
    %v1173 = vsel %vm432, %v1159, 0
    %v1176 = vsel %vm432, %v1160, 0
    %1178 = vmatpush.bf16.msra.mxu0 0
    %1179 = vmatpush.bf16.msra.mxu0 0
    %1180 = vmatpush.bf16.msra.mxu0 0
    %1181 = vmatpush.bf16.msra.mxu0 0
    %1182 = vmatpush.bf16.msra.mxu0 0
    %1183 = vmatpush.bf16.msra.mxu0 0
    %1184 = vmatpush.bf16.msra.mxu0 0
    %1185 = vmatpush.bf16.msra.mxu0 %v1167
    %1186 = vmatmul.bf16.gmra.mxu0 %v1164
    %v1187 = vpop.f32.mrf.mxu0
    %v1188 = vadd.f32 0.0, %v1187
    %v1189 = vpop.f32.mrf.mxu0
    %1190 = vdwg.mxu0
    %1191 = vmatpush.bf16.msra.mxu0 0
    %1192 = vmatpush.bf16.msra.mxu0 0
    %1193 = vmatpush.bf16.msra.mxu0 0
    %1194 = vmatpush.bf16.msra.mxu0 0
    %1195 = vmatpush.bf16.msra.mxu0 0
    %1196 = vmatpush.bf16.msra.mxu0 0
    %1197 = vmatpush.bf16.msra.mxu0 0
    %1198 = vmatpush.bf16.msra.mxu0 %v1170
    %1199 = vmatmul.bf16.gmra.mxu0 %v1164
    %v1200 = vpop.f32.mrf.mxu0
    %v1201 = vadd.f32 0.0, %v1200
    %v1202 = vpop.f32.mrf.mxu0
    %1203 = vdwg.mxu0
    %1204 = vmatpush.bf16.msra.mxu0 0
    %1205 = vmatpush.bf16.msra.mxu0 0
    %1206 = vmatpush.bf16.msra.mxu0 0
    %1207 = vmatpush.bf16.msra.mxu0 0
    %1208 = vmatpush.bf16.msra.mxu0 0
    %1209 = vmatpush.bf16.msra.mxu0 0
    %1210 = vmatpush.bf16.msra.mxu0 0
    %1211 = vmatpush.bf16.msra.mxu0 %v1173
    %1212 = vmatmul.bf16.gmra.mxu0 %v1164
    %v1213 = vpop.f32.mrf.mxu0
    %v1214 = vadd.f32 0.0, %v1213
    %v1215 = vpop.f32.mrf.mxu0
    %1216 = vdwg.mxu0
    %1217 = vmatpush.bf16.msra.mxu0 0
    %1218 = vmatpush.bf16.msra.mxu0 0
    %1219 = vmatpush.bf16.msra.mxu0 0
    %1220 = vmatpush.bf16.msra.mxu0 0
    %1221 = vmatpush.bf16.msra.mxu0 0
    %1222 = vmatpush.bf16.msra.mxu0 0
    %1223 = vmatpush.bf16.msra.mxu0 0
    %1224 = vmatpush.bf16.msra.mxu0 %v1176
    %1225 = vmatmul.bf16.gmra.mxu0 %v1164
    %v1226 = vpop.f32.mrf.mxu0
    %v1227 = vadd.f32 0.0, %v1226
    %v1228 = vpop.f32.mrf.mxu0
    %1229 = vdwg.mxu0
    %v1230 = vadd.f32 %v1132, %v1188
    %v1231 = vadd.f32 %v1133, %v1201
    %v1232 = vadd.f32 %v1134, %v1214
    %v1233 = vadd.f32 %v1135, %v1227
    %v1234 = vld [vmem:[%s7] sm:$0xf]
    %v1235 = vld [vmem:[%s8] sm:$0xf]
    %v1236 = vsel %vm158, %v1230, 0.0
    %v1237 = vsel %vm158, %v1231, 0.0
    %v1238 = vadd.f32 %v1236, %v1237
    %v1239 = vsel %vm158, %v1232, 0.0
    %v1240 = vadd.f32 %v1238, %v1239
    %v1241 = vsel %vm158, %v1233, 0.0
    %v1242 = vadd.f32 %v1240, %v1241
    %1243 = vadd.xlane.f32.xlu0 %v1242
    %v1244 = vpop.xlane.xlu0 %1243
    %v1245 = vmul.f32 %v1244, 0.001953125
    %v1246 = vmul.f32 %v1230, %v1230
    %v1247 = vmul.f32 %v1231, %v1231
    %v1248 = vmul.f32 %v1232, %v1232
    %v1249 = vmul.f32 %v1233, %v1233
    %v1250 = vsel %vm158, %v1246, 0.0
    %v1251 = vsel %vm158, %v1247, 0.0
    %v1252 = vadd.f32 %v1250, %v1251
    %v1253 = vsel %vm158, %v1248, 0.0
    %v1254 = vadd.f32 %v1252, %v1253
    %v1255 = vsel %vm158, %v1249, 0.0
    %v1256 = vadd.f32 %v1254, %v1255
    %1257 = vadd.xlane.f32.xlu0 %v1256
    %v1258 = vpop.xlane.xlu0 %1257
    %v1259 = vmul.f32 %v1258, 0.001953125
    %v1260 = vmul.f32 %v1245, %v1245
    %v1261 = vsub.f32 %v1259, %v1260
    %v1262 = vmax.f32 %v1261, 0.0
    %v1263 = vadd.f32 %v1262, 1e-05
    %v1264 = vrsqrt.pop %v1263
    %v1265 = vmul.f32 %v1264, %v1263
    %v1266 = vmul.f32 %v1265, %v1264
    %v1267 = vmul.f32 0.5, %v1266
    %v1268 = vsub.f32 1.5, %v1267
    %v1269 = vmul.f32 %v1264, %v1268
    %vm1270 = vweird.f32 %v1263
    %vm1271 = vweird.f32 %v1264
    %vm1272 = vmor %vm1270, %vm1271
    %v1273 = vsel %vm1272, %v1264, %v1269
    %v1274 = vmul.f32 %v1234, %v1273
    %v1275 = vmul.f32 %v1245, %v1274
    %v1276 = vsub.f32 %v1235, %v1275
    %1278 = vset.pattern.permute.xlu0 0
    %1279 = vperm.xlu0 %1278, %v1274
    %v1280 = vpop.permute.xlu0 %1279
    %v1282 = vmul.f32 %v1230, %v1280
    %v1283 = vmul.f32 %v1231, %v1280
    %v1284 = vmul.f32 %v1232, %v1280
    %v1285 = vmul.f32 %v1233, %v1280
    %1287 = vset.pattern.permute.xlu0 0
    %1288 = vperm.xlu0 %1287, %v1276
    %v1289 = vpop.permute.xlu0 %1288
    %v1291 = vadd.f32 %v1282, %v1289
    %v1292 = vadd.f32 %v1283, %v1289
    %v1293 = vadd.f32 %v1284, %v1289
    %v1294 = vadd.f32 %v1285, %v1289
    %v1295 = vmax.f32 %v1291, 0.0
    %v1296 = vmax.f32 %v1292, 0.0
    %v1297 = vmax.f32 %v1293, 0.0
    %v1298 = vmax.f32 %v1294, 0.0
    %v1299 = vld [vmem:[%s9] sm:$0xf]
    %v1300 = vld [vmem:[%s10] sm:$0xf]
    %v1301 = vsel %vm158, %v1295, 0.0
    %v1302 = vsel %vm158, %v1296, 0.0
    %v1303 = vadd.f32 %v1301, %v1302
    %v1304 = vsel %vm158, %v1297, 0.0
    %v1305 = vadd.f32 %v1303, %v1304
    %v1306 = vsel %vm158, %v1298, 0.0
    %v1307 = vadd.f32 %v1305, %v1306
    %1308 = vadd.xlane.f32.xlu0 %v1307
    %v1309 = vpop.xlane.xlu0 %1308
    %v1310 = vmul.f32 %v1309, 0.001953125
    %v1311 = vmul.f32 %v1295, %v1295
    %v1312 = vmul.f32 %v1296, %v1296
    %v1313 = vmul.f32 %v1297, %v1297
    %v1314 = vmul.f32 %v1298, %v1298
    %v1315 = vsel %vm158, %v1311, 0.0
    %v1316 = vsel %vm158, %v1312, 0.0
    %v1317 = vadd.f32 %v1315, %v1316
    %v1318 = vsel %vm158, %v1313, 0.0
    %v1319 = vadd.f32 %v1317, %v1318
    %v1320 = vsel %vm158, %v1314, 0.0
    %v1321 = vadd.f32 %v1319, %v1320
    %1322 = vadd.xlane.f32.xlu0 %v1321
    %v1323 = vpop.xlane.xlu0 %1322
    %v1324 = vmul.f32 %v1323, 0.001953125
    %v1325 = vmul.f32 %v1310, %v1310
    %v1326 = vsub.f32 %v1324, %v1325
    %v1327 = vmax.f32 %v1326, 0.0
    %v1328 = vadd.f32 %v1327, 1e-05
    %v1329 = vrsqrt.pop %v1328
    %v1330 = vmul.f32 %v1329, %v1328
    %v1331 = vmul.f32 %v1330, %v1329
    %v1332 = vmul.f32 0.5, %v1331
    %v1333 = vsub.f32 1.5, %v1332
    %v1334 = vmul.f32 %v1329, %v1333
    %vm1335 = vweird.f32 %v1328
    %vm1336 = vweird.f32 %v1329
    %vm1337 = vmor %vm1335, %vm1336
    %v1338 = vsel %vm1337, %v1329, %v1334
    %v1339 = vmul.f32 %v1299, %v1338
    %v1340 = vmul.f32 %v1310, %v1339
    %v1341 = vsub.f32 %v1300, %v1340
    %1343 = vset.pattern.permute.xlu0 0
    %1344 = vperm.xlu0 %1343, %v1339
    %v1345 = vpop.permute.xlu0 %1344
    %v1347 = vmul.f32 %v1295, %v1345
    %v1348 = vmul.f32 %v1296, %v1345
    %v1349 = vmul.f32 %v1297, %v1345
    %v1350 = vmul.f32 %v1298, %v1345
    %1352 = vset.pattern.permute.xlu0 0
    %1353 = vperm.xlu0 %1352, %v1341
    %v1354 = vpop.permute.xlu0 %1353
    %v1356 = vadd.f32 %v1347, %v1354
    %v1357 = vadd.f32 %v1348, %v1354
    %v1358 = vadd.f32 %v1349, %v1354
    %v1359 = vadd.f32 %v1350, %v1354
    %v1360 = vmax.f32 %v1356, 0.0
    %v1361 = vmax.f32 %v1357, 0.0
    %v1362 = vmax.f32 %v1358, 0.0
    %v1363 = vmax.f32 %v1359, 0.0
    %v1364 = vld [vmem:[%s11] sm:$0xf]
    %v1365 = vpack.c.bf16 %v1360, %v1360
    %v1366 = vpack.c.bf16 %v1361, %v1361
    %v1367 = vpack.c.bf16 %v1362, %v1362
    %v1368 = vpack.c.bf16 %v1363, %v1363
    %v1370 = vsel %vm428, %v1364, 0
    %v1373 = vsel %vm432, %v1365, 0
    %v1376 = vsel %vm432, %v1366, 0
    %v1379 = vsel %vm432, %v1367, 0
    %v1382 = vsel %vm432, %v1368, 0
    %1384 = vmatpush.bf16.msra.mxu0 0
    %1385 = vmatpush.bf16.msra.mxu0 0
    %1386 = vmatpush.bf16.msra.mxu0 0
    %1387 = vmatpush.bf16.msra.mxu0 0
    %1388 = vmatpush.bf16.msra.mxu0 0
    %1389 = vmatpush.bf16.msra.mxu0 0
    %1390 = vmatpush.bf16.msra.mxu0 0
    %1391 = vmatpush.bf16.msra.mxu0 %v1373
    %1392 = vmatmul.bf16.gmra.mxu0 %v1370
    %v1393 = vpop.f32.mrf.mxu0
    %v1394 = vadd.f32 0.0, %v1393
    %v1395 = vpop.f32.mrf.mxu0
    %1396 = vdwg.mxu0
    %1397 = vmatpush.bf16.msra.mxu0 0
    %1398 = vmatpush.bf16.msra.mxu0 0
    %1399 = vmatpush.bf16.msra.mxu0 0
    %1400 = vmatpush.bf16.msra.mxu0 0
    %1401 = vmatpush.bf16.msra.mxu0 0
    %1402 = vmatpush.bf16.msra.mxu0 0
    %1403 = vmatpush.bf16.msra.mxu0 0
    %1404 = vmatpush.bf16.msra.mxu0 %v1376
    %1405 = vmatmul.bf16.gmra.mxu0 %v1370
    %v1406 = vpop.f32.mrf.mxu0
    %v1407 = vadd.f32 0.0, %v1406
    %v1408 = vpop.f32.mrf.mxu0
    %1409 = vdwg.mxu0
    %1410 = vmatpush.bf16.msra.mxu0 0
    %1411 = vmatpush.bf16.msra.mxu0 0
    %1412 = vmatpush.bf16.msra.mxu0 0
    %1413 = vmatpush.bf16.msra.mxu0 0
    %1414 = vmatpush.bf16.msra.mxu0 0
    %1415 = vmatpush.bf16.msra.mxu0 0
    %1416 = vmatpush.bf16.msra.mxu0 0
    %1417 = vmatpush.bf16.msra.mxu0 %v1379
    %1418 = vmatmul.bf16.gmra.mxu0 %v1370
    %v1419 = vpop.f32.mrf.mxu0
    %v1420 = vadd.f32 0.0, %v1419
    %v1421 = vpop.f32.mrf.mxu0
    %1422 = vdwg.mxu0
    %1423 = vmatpush.bf16.msra.mxu0 0
    %1424 = vmatpush.bf16.msra.mxu0 0
    %1425 = vmatpush.bf16.msra.mxu0 0
    %1426 = vmatpush.bf16.msra.mxu0 0
    %1427 = vmatpush.bf16.msra.mxu0 0
    %1428 = vmatpush.bf16.msra.mxu0 0
    %1429 = vmatpush.bf16.msra.mxu0 0
    %1430 = vmatpush.bf16.msra.mxu0 %v1382
    %1431 = vmatmul.bf16.gmra.mxu0 %v1370
    %v1432 = vpop.f32.mrf.mxu0
    %v1433 = vadd.f32 0.0, %v1432
    %v1434 = vpop.f32.mrf.mxu0
    %1435 = vdwg.mxu0
    %v1436 = vld [vmem:[%s12] sm:$0xff]
    %v1437 = vld [vmem:[%s13] sm:$0xff]
    %v1438 = vadd.f32 %v1394, %v1407
    %v1439 = vadd.f32 %v1438, %v1420
    %v1440 = vadd.f32 %v1439, %v1433
    %1441 = vadd.xlane.f32.xlu0 %v1440
    %v1442 = vpop.xlane.xlu0 %1441
    %v1443 = vmul.f32 %v1442, 0.001953125
    %v1444 = vmul.f32 %v1394, %v1394
    %v1445 = vmul.f32 %v1407, %v1407
    %v1446 = vmul.f32 %v1420, %v1420
    %v1447 = vmul.f32 %v1433, %v1433
    %v1448 = vadd.f32 %v1444, %v1445
    %v1449 = vadd.f32 %v1448, %v1446
    %v1450 = vadd.f32 %v1449, %v1447
    %1451 = vadd.xlane.f32.xlu0 %v1450
    %v1452 = vpop.xlane.xlu0 %1451
    %v1453 = vmul.f32 %v1452, 0.001953125
    %v1454 = vmul.f32 %v1443, %v1443
    %v1455 = vsub.f32 %v1453, %v1454
    %v1456 = vmax.f32 %v1455, 0.0
    %v1457 = vadd.f32 %v1456, 1e-05
    %v1458 = vrsqrt.pop %v1457
    %v1459 = vmul.f32 %v1458, %v1457
    %v1460 = vmul.f32 %v1459, %v1458
    %v1461 = vmul.f32 0.5, %v1460
    %v1462 = vsub.f32 1.5, %v1461
    %v1463 = vmul.f32 %v1458, %v1462
    %vm1464 = vweird.f32 %v1457
    %vm1465 = vweird.f32 %v1458
    %vm1466 = vmor %vm1464, %vm1465
    %v1467 = vsel %vm1466, %v1458, %v1463
    %v1468 = vmul.f32 %v1436, %v1467
    %v1469 = vmul.f32 %v1443, %v1468
    %v1470 = vsub.f32 %v1437, %v1469
    %1472 = vset.pattern.permute.xlu0 0
    %1473 = vperm.xlu0 %1472, %v1468
    %v1474 = vpop.permute.xlu0 %1473
    %v1476 = vmul.f32 %v1394, %v1474
    %v1477 = vmul.f32 %v1407, %v1474
    %v1478 = vmul.f32 %v1420, %v1474
    %v1479 = vmul.f32 %v1433, %v1474
    %1481 = vset.pattern.permute.xlu0 0
    %1482 = vperm.xlu0 %1481, %v1470
    %v1483 = vpop.permute.xlu0 %1482
    %v1485 = vadd.f32 %v1476, %v1483
    %v1486 = vadd.f32 %v1477, %v1483
    %v1487 = vadd.f32 %v1478, %v1483
    %v1488 = vadd.f32 %v1479, %v1483
    %v1489 = vmax.f32 %v1485, 0.0
    %v1490 = vmax.f32 %v1486, 0.0
    %v1491 = vmax.f32 %v1487, 0.0
    %v1492 = vmax.f32 %v1488, 0.0
    %v1493 = vld [vmem:[%s14] sm:$0xff]
    %v1494 = vld [vmem:[%s14 + $0x8] sm:$0xff]
    %v1495 = vld [vmem:[%s14 + $0x10] sm:$0xff]
    %v1496 = vld [vmem:[%s14 + $0x18] sm:$0xff]
    %v1497 = vld [vmem:[%s14 + $0x20] sm:$0xff]
    %v1498 = vld [vmem:[%s14 + $0x28] sm:$0xff]
    %v1499 = vld [vmem:[%s14 + $0x30] sm:$0xff]
    %v1500 = vld [vmem:[%s14 + $0x38] sm:$0xff]
    %v1501 = vld [vmem:[%s14 + $0x40] sm:$0xff]
    %v1502 = vld [vmem:[%s14 + $0x48] sm:$0xff]
    %v1503 = vld [vmem:[%s14 + $0x50] sm:$0xff]
    %v1504 = vld [vmem:[%s14 + $0x58] sm:$0xff]
    %v1505 = vld [vmem:[%s14 + $0x60] sm:$0xff]
    %v1506 = vld [vmem:[%s14 + $0x68] sm:$0xff]
    %v1507 = vld [vmem:[%s14 + $0x70] sm:$0xff]
    %v1508 = vld [vmem:[%s14 + $0x78] sm:$0xff]
    %v1509 = vld [vmem:[%s14 + $0x80] sm:$0xff]
    %v1510 = vld [vmem:[%s14 + $0x88] sm:$0xff]
    %v1511 = vld [vmem:[%s14 + $0x90] sm:$0xff]
    %v1512 = vld [vmem:[%s14 + $0x98] sm:$0xff]
    %v1513 = vld [vmem:[%s14 + $0xa0] sm:$0xff]
    %v1514 = vld [vmem:[%s14 + $0xa8] sm:$0xff]
    %v1515 = vld [vmem:[%s14 + $0xb0] sm:$0xff]
    %v1516 = vld [vmem:[%s14 + $0xb8] sm:$0xff]
    %v1517 = vld [vmem:[%s14 + $0xc0] sm:$0xff]
    %v1518 = vld [vmem:[%s14 + $0xc8] sm:$0xff]
    %v1519 = vld [vmem:[%s14 + $0xd0] sm:$0xff]
    %v1520 = vld [vmem:[%s14 + $0xd8] sm:$0xff]
    %v1521 = vld [vmem:[%s14 + $0xe0] sm:$0xff]
    %v1522 = vld [vmem:[%s14 + $0xe8] sm:$0xff]
    %v1523 = vld [vmem:[%s14 + $0xf0] sm:$0xff]
    %v1524 = vld [vmem:[%s14 + $0xf8] sm:$0xff]
    %v1525 = vld [vmem:[%s14 + $0x100] sm:$0xff]
    %v1526 = vld [vmem:[%s14 + $0x108] sm:$0xff]
    %v1527 = vld [vmem:[%s14 + $0x110] sm:$0xff]
    %v1528 = vld [vmem:[%s14 + $0x118] sm:$0xff]
    %v1529 = vld [vmem:[%s14 + $0x120] sm:$0xff]
    %v1530 = vld [vmem:[%s14 + $0x128] sm:$0xff]
    %v1531 = vld [vmem:[%s14 + $0x130] sm:$0xff]
    %v1532 = vld [vmem:[%s14 + $0x138] sm:$0xff]
    %v1533 = vld [vmem:[%s14 + $0x140] sm:$0xff]
    %v1534 = vld [vmem:[%s14 + $0x148] sm:$0xff]
    %v1535 = vld [vmem:[%s14 + $0x150] sm:$0xff]
    %v1536 = vld [vmem:[%s14 + $0x158] sm:$0xff]
    %v1537 = vld [vmem:[%s14 + $0x160] sm:$0xff]
    %v1538 = vld [vmem:[%s14 + $0x168] sm:$0xff]
    %v1539 = vld [vmem:[%s14 + $0x170] sm:$0xff]
    %v1540 = vld [vmem:[%s14 + $0x178] sm:$0xff]
    %v1541 = vld [vmem:[%s14 + $0x180] sm:$0xff]
    %v1542 = vld [vmem:[%s14 + $0x188] sm:$0xff]
    %v1543 = vld [vmem:[%s14 + $0x190] sm:$0xff]
    %v1544 = vld [vmem:[%s14 + $0x198] sm:$0xff]
    %v1545 = vld [vmem:[%s14 + $0x1a0] sm:$0xff]
    %v1546 = vld [vmem:[%s14 + $0x1a8] sm:$0xff]
    %v1547 = vld [vmem:[%s14 + $0x1b0] sm:$0xff]
    %v1548 = vld [vmem:[%s14 + $0x1b8] sm:$0xff]
    %v1549 = vld [vmem:[%s14 + $0x1c0] sm:$0xff]
    %v1550 = vld [vmem:[%s14 + $0x1c8] sm:$0xff]
    %v1551 = vld [vmem:[%s14 + $0x1d0] sm:$0xff]
    %v1552 = vld [vmem:[%s14 + $0x1d8] sm:$0xff]
    %v1553 = vld [vmem:[%s14 + $0x1e0] sm:$0xff]
    %v1554 = vld [vmem:[%s14 + $0x1e8] sm:$0xff]
    %v1555 = vld [vmem:[%s14 + $0x1f0] sm:$0xff]
    %v1556 = vld [vmem:[%s14 + $0x1f8] sm:$0xff]
    %1557 = vmatpush.msra.mxu0 %v1508
    %1558 = vmatpush.msra.mxu0 %v1507
    %1559 = vmatpush.msra.mxu0 %v1506
    %1560 = vmatpush.msra.mxu0 %v1505
    %1561 = vmatpush.msra.mxu0 %v1504
    %1562 = vmatpush.msra.mxu0 %v1503
    %1563 = vmatpush.msra.mxu0 %v1502
    %1564 = vmatpush.msra.mxu0 %v1501
    %1565 = vmatpush.msra.mxu0 %v1500
    %1566 = vmatpush.msra.mxu0 %v1499
    %1567 = vmatpush.msra.mxu0 %v1498
    %1568 = vmatpush.msra.mxu0 %v1497
    %1569 = vmatpush.msra.mxu0 %v1496
    %1570 = vmatpush.msra.mxu0 %v1495
    %1571 = vmatpush.msra.mxu0 %v1494
    %1572 = vmatpush.msra.mxu0 %v1493
    %1573 = vmatmul.f32.gmra.mxu0 %v1489
    %v1574 = vpop.f32.mrf.mxu0
    %v1575 = vadd.f32 0.0, %v1574
    %1576 = vdwg.mxu0
    %1577 = vmatpush.msra.mxu0 %v1524
    %1578 = vmatpush.msra.mxu0 %v1523
    %1579 = vmatpush.msra.mxu0 %v1522
    %1580 = vmatpush.msra.mxu0 %v1521
    %1581 = vmatpush.msra.mxu0 %v1520
    %1582 = vmatpush.msra.mxu0 %v1519
    %1583 = vmatpush.msra.mxu0 %v1518
    %1584 = vmatpush.msra.mxu0 %v1517
    %1585 = vmatpush.msra.mxu0 %v1516
    %1586 = vmatpush.msra.mxu0 %v1515
    %1587 = vmatpush.msra.mxu0 %v1514
    %1588 = vmatpush.msra.mxu0 %v1513
    %1589 = vmatpush.msra.mxu0 %v1512
    %1590 = vmatpush.msra.mxu0 %v1511
    %1591 = vmatpush.msra.mxu0 %v1510
    %1592 = vmatpush.msra.mxu0 %v1509
    %1593 = vmatmul.f32.gmra.mxu0 %v1490
    %v1594 = vpop.f32.mrf.mxu0
    %v1595 = vadd.f32 %v1575, %v1594
    %1596 = vdwg.mxu0
    %1597 = vmatpush.msra.mxu0 %v1540
    %1598 = vmatpush.msra.mxu0 %v1539
    %1599 = vmatpush.msra.mxu0 %v1538
    %1600 = vmatpush.msra.mxu0 %v1537
    %1601 = vmatpush.msra.mxu0 %v1536
    %1602 = vmatpush.msra.mxu0 %v1535
    %1603 = vmatpush.msra.mxu0 %v1534
    %1604 = vmatpush.msra.mxu0 %v1533
    %1605 = vmatpush.msra.mxu0 %v1532
    %1606 = vmatpush.msra.mxu0 %v1531
    %1607 = vmatpush.msra.mxu0 %v1530
    %1608 = vmatpush.msra.mxu0 %v1529
    %1609 = vmatpush.msra.mxu0 %v1528
    %1610 = vmatpush.msra.mxu0 %v1527
    %1611 = vmatpush.msra.mxu0 %v1526
    %1612 = vmatpush.msra.mxu0 %v1525
    %1613 = vmatmul.f32.gmra.mxu0 %v1491
    %v1614 = vpop.f32.mrf.mxu0
    %v1615 = vadd.f32 %v1595, %v1614
    %1616 = vdwg.mxu0
    %1617 = vmatpush.msra.mxu0 %v1556
    %1618 = vmatpush.msra.mxu0 %v1555
    %1619 = vmatpush.msra.mxu0 %v1554
    %1620 = vmatpush.msra.mxu0 %v1553
    %1621 = vmatpush.msra.mxu0 %v1552
    %1622 = vmatpush.msra.mxu0 %v1551
    %1623 = vmatpush.msra.mxu0 %v1550
    %1624 = vmatpush.msra.mxu0 %v1549
    %1625 = vmatpush.msra.mxu0 %v1548
    %1626 = vmatpush.msra.mxu0 %v1547
    %1627 = vmatpush.msra.mxu0 %v1546
    %1628 = vmatpush.msra.mxu0 %v1545
    %1629 = vmatpush.msra.mxu0 %v1544
    %1630 = vmatpush.msra.mxu0 %v1543
    %1631 = vmatpush.msra.mxu0 %v1542
    %1632 = vmatpush.msra.mxu0 %v1541
    %1633 = vmatmul.f32.gmra.mxu0 %v1492
    %v1634 = vpop.f32.mrf.mxu0
    %v1635 = vadd.f32 %v1615, %v1634
    %1636 = vdwg.mxu0
    %v1637 = vmul.f32 %v1635, 0.00390625
    %v1638 = vld [vmem:[%s16] sm:$0xf]
    %v1639 = vld [vmem:[%s17] sm:$0xf]
    %1641 = vset.pattern.permute.xlu0 0
    %1642 = vperm.xlu0 %1641, %v1639
    %v1643 = vpop.permute.xlu0 %1642
    %vm1645 = vcmask 64512
    %v1647 = vsel %vm1645, %v1638, 0
    %1649 = vmatpush.msra.mxu0 0.0
    %1650 = vmatpush.msra.mxu0 0.0
    %1651 = vmatpush.msra.mxu0 0.0
    %1652 = vmatpush.msra.mxu0 0.0
    %1653 = vmatpush.msra.mxu0 0.0
    %1654 = vmatpush.msra.mxu0 0.0
    %1655 = vmatpush.msra.mxu0 0.0
    %1656 = vmatpush.msra.mxu0 0.0
    %1657 = vmatpush.msra.mxu0 0.0
    %1658 = vmatpush.msra.mxu0 0.0
    %1659 = vmatpush.msra.mxu0 0.0
    %1660 = vmatpush.msra.mxu0 0.0
    %1661 = vmatpush.msra.mxu0 0.0
    %1662 = vmatpush.msra.mxu0 0.0
    %1663 = vmatpush.msra.mxu0 0.0
    %1664 = vmatpush.msra.mxu0 %v1637
    %1665 = vmatmul.f32.gmra.mxu0 %v1647
    %v1666 = vpop.f32.mrf.mxu0
    %v1667 = vadd.f32 %v1643, %v1666
    %1668 = vdwg.mxu0
    %v1669 = vmax.f32 %v1667, 0.0
    %v1670 = vld [vmem:[%s18] sm:$0xff]
    %v1671 = vld [vmem:[%s19] sm:$0xff]
    %1673 = vset.pattern.permute.xlu0 0
    %1674 = vperm.xlu0 %1673, %v1671
    %v1675 = vpop.permute.xlu0 %1674
    %v1678 = vsel %vm428, %v1670, 0
    %v1681 = vsel %vm158, %v1669, 0
    %1683 = vmatpush.msra.mxu0 0.0
    %1684 = vmatpush.msra.mxu0 0.0
    %1685 = vmatpush.msra.mxu0 0.0
    %1686 = vmatpush.msra.mxu0 0.0
    %1687 = vmatpush.msra.mxu0 0.0
    %1688 = vmatpush.msra.mxu0 0.0
    %1689 = vmatpush.msra.mxu0 0.0
    %1690 = vmatpush.msra.mxu0 0.0
    %1691 = vmatpush.msra.mxu0 0.0
    %1692 = vmatpush.msra.mxu0 0.0
    %1693 = vmatpush.msra.mxu0 0.0
    %1694 = vmatpush.msra.mxu0 0.0
    %1695 = vmatpush.msra.mxu0 0.0
    %1696 = vmatpush.msra.mxu0 0.0
    %1697 = vmatpush.msra.mxu0 0.0
    %1698 = vmatpush.msra.mxu0 %v1681
    %1699 = vmatmul.f32.gmra.mxu0 %v1678
    %v1700 = vpop.f32.mrf.mxu0
    %v1701 = vadd.f32 %v1675, %v1700
    %1702 = vdwg.mxu0
    %v1703 = vsub.f32 0.0, %v1701
    %v1704 = vmul.f32 %v1703, 1.442695
    %v1705 = vpow.pop %v1704
    %v1706 = vadd.f32 %v1705, 1.0
    %v1707 = vrcp.pop %v1706
    %v1708 = vmul.f32 %v1706, %v1707
    %v1709 = vsub.f32 1.0, %v1708
    %v1710 = vmul.f32 %v1707, %v1709
    %v1711 = vadd.f32 %v1707, %v1710
    %vm1712 = vweird.f32 %v1706
    %vm1713 = vweird.f32 %v1707
    %vm1714 = vmor %vm1712, %vm1713
    %v1715 = vsel %vm1714, %v1707, %v1711
    %v1716 = vand.u32 2147483647, %v1706
    %vm1717 = vcmp.eq.f32.partialorder %v1716, 8.507059e+37
    %v1718 = vand.u32 %v1706, 2147483648
    %v1719 = vor.u32 1.1754944e-38, %v1718
    %v1720 = vsel %vm1717, %v1719, %v1715
    %v1721 = vmul.f32 1.0, %v1720
    %v1722 = vld [vmem:[%s15] sm:$0xff]
    %v1723 = vld [vmem:[%s20] sm:$0x1]
    %v1724 = vpack.c.bf16 %v1489, %v1489
    %v1725 = vpack.c.bf16 %v1490, %v1490
    %v1726 = vpack.c.bf16 %v1491, %v1491
    %v1727 = vpack.c.bf16 %v1492, %v1492
    %v1728 = vld [vmem:[#allocation2] sm:$0x1]
    %1730 = vset.pattern.permute.xlu0 0
    %1731 = vperm.xlu0 %1730, %v1728
    %v1732 = vpop.permute.xlu0 %1731
    %v1734 = vperm.slane %v1732, 0
    %v1736 = vsel %vm1645, %v1723, 0
    %v1739 = vsel %vm158, %v1724, 0
    %v1742 = vsel %vm158, %v1725, 0
    %v1745 = vsel %vm158, %v1726, 0
    %v1748 = vsel %vm158, %v1727, 0
    %1750 = vmatpush.bf16.msra.mxu0 0
    %1751 = vmatpush.bf16.msra.mxu0 0
    %1752 = vmatpush.bf16.msra.mxu0 0
    %1753 = vmatpush.bf16.msra.mxu0 0
    %1754 = vmatpush.bf16.msra.mxu0 0
    %1755 = vmatpush.bf16.msra.mxu0 0
    %1756 = vmatpush.bf16.msra.mxu0 0
    %1757 = vmatpush.bf16.msra.mxu0 %v1739
    %1758 = vmatmul.bf16.gmra.mxu0 %v1736
    %v1759 = vpop.f32.mrf.mxu0
    %v1760 = vadd.f32 %v1734, %v1759
    %v1761 = vpop.f32.mrf.mxu0
    %1762 = vdwg.mxu0
    %1763 = vmatpush.bf16.msra.mxu0 0
    %1764 = vmatpush.bf16.msra.mxu0 0
    %1765 = vmatpush.bf16.msra.mxu0 0
    %1766 = vmatpush.bf16.msra.mxu0 0
    %1767 = vmatpush.bf16.msra.mxu0 0
    %1768 = vmatpush.bf16.msra.mxu0 0
    %1769 = vmatpush.bf16.msra.mxu0 0
    %1770 = vmatpush.bf16.msra.mxu0 %v1742
    %1771 = vmatmul.bf16.gmra.mxu0 %v1736
    %v1772 = vpop.f32.mrf.mxu0
    %v1773 = vadd.f32 %v1734, %v1772
    %v1774 = vpop.f32.mrf.mxu0
    %1775 = vdwg.mxu0
    %1776 = vmatpush.bf16.msra.mxu0 0
    %1777 = vmatpush.bf16.msra.mxu0 0
    %1778 = vmatpush.bf16.msra.mxu0 0
    %1779 = vmatpush.bf16.msra.mxu0 0
    %1780 = vmatpush.bf16.msra.mxu0 0
    %1781 = vmatpush.bf16.msra.mxu0 0
    %1782 = vmatpush.bf16.msra.mxu0 0
    %1783 = vmatpush.bf16.msra.mxu0 %v1745
    %1784 = vmatmul.bf16.gmra.mxu0 %v1736
    %v1785 = vpop.f32.mrf.mxu0
    %v1786 = vadd.f32 %v1734, %v1785
    %v1787 = vpop.f32.mrf.mxu0
    %1788 = vdwg.mxu0
    %1789 = vmatpush.bf16.msra.mxu0 0
    %1790 = vmatpush.bf16.msra.mxu0 0
    %1791 = vmatpush.bf16.msra.mxu0 0
    %1792 = vmatpush.bf16.msra.mxu0 0
    %1793 = vmatpush.bf16.msra.mxu0 0
    %1794 = vmatpush.bf16.msra.mxu0 0
    %1795 = vmatpush.bf16.msra.mxu0 0
    %1796 = vmatpush.bf16.msra.mxu0 %v1748
    %1797 = vmatmul.bf16.gmra.mxu0 %v1736
    %v1798 = vpop.f32.mrf.mxu0
    %v1799 = vadd.f32 %v1734, %v1798
    %v1800 = vpop.f32.mrf.mxu0
    %1801 = vdwg.mxu0
    %v1802 = vsub.f32 0.0, %v1760
    %v1803 = vsub.f32 0.0, %v1773
    %v1804 = vsub.f32 0.0, %v1786
    %v1805 = vsub.f32 0.0, %v1799
    %v1806 = vmul.f32 %v1802, 1.442695
    %v1807 = vpow.pop %v1806
    %v1808 = vmul.f32 %v1803, 1.442695
    %v1809 = vpow.pop %v1808
    %v1810 = vmul.f32 %v1804, 1.442695
    %v1811 = vpow.pop %v1810
    %v1812 = vmul.f32 %v1805, 1.442695
    %v1813 = vpow.pop %v1812
    %v1814 = vadd.f32 %v1807, 1.0
    %v1815 = vadd.f32 %v1809, 1.0
    %v1816 = vadd.f32 %v1811, 1.0
    %v1817 = vadd.f32 %v1813, 1.0
    %v1818 = vrcp.pop %v1814
    %v1819 = vmul.f32 %v1814, %v1818
    %v1820 = vsub.f32 1.0, %v1819
    %v1821 = vmul.f32 %v1818, %v1820
    %v1822 = vadd.f32 %v1818, %v1821
    %vm1823 = vweird.f32 %v1814
    %vm1824 = vweird.f32 %v1818
    %vm1825 = vmor %vm1823, %vm1824
    %v1826 = vsel %vm1825, %v1818, %v1822
    %v1827 = vand.u32 2147483647, %v1814
    %vm1828 = vcmp.eq.f32.partialorder %v1827, 8.507059e+37
    %v1829 = vand.u32 %v1814, 2147483648
    %v1830 = vor.u32 1.1754944e-38, %v1829
    %v1831 = vsel %vm1828, %v1830, %v1826
    %v1832 = vmul.f32 1.0, %v1831
    %v1833 = vrcp.pop %v1815
    %v1834 = vmul.f32 %v1815, %v1833
    %v1835 = vsub.f32 1.0, %v1834
    %v1836 = vmul.f32 %v1833, %v1835
    %v1837 = vadd.f32 %v1833, %v1836
    %vm1838 = vweird.f32 %v1815
    %vm1839 = vweird.f32 %v1833
    %vm1840 = vmor %vm1838, %vm1839
    %v1841 = vsel %vm1840, %v1833, %v1837
    %v1842 = vand.u32 2147483647, %v1815
    %vm1843 = vcmp.eq.f32.partialorder %v1842, 8.507059e+37
    %v1844 = vand.u32 %v1815, 2147483648
    %v1845 = vor.u32 1.1754944e-38, %v1844
    %v1846 = vsel %vm1843, %v1845, %v1841
    %v1847 = vmul.f32 1.0, %v1846
    %v1848 = vrcp.pop %v1816
    %v1849 = vmul.f32 %v1816, %v1848
    %v1850 = vsub.f32 1.0, %v1849
    %v1851 = vmul.f32 %v1848, %v1850
    %v1852 = vadd.f32 %v1848, %v1851
    %vm1853 = vweird.f32 %v1816
    %vm1854 = vweird.f32 %v1848
    %vm1855 = vmor %vm1853, %vm1854
    %v1856 = vsel %vm1855, %v1848, %v1852
    %v1857 = vand.u32 2147483647, %v1816
    %vm1858 = vcmp.eq.f32.partialorder %v1857, 8.507059e+37
    %v1859 = vand.u32 %v1816, 2147483648
    %v1860 = vor.u32 1.1754944e-38, %v1859
    %v1861 = vsel %vm1858, %v1860, %v1856
    %v1862 = vmul.f32 1.0, %v1861
    %v1863 = vrcp.pop %v1817
    %v1864 = vmul.f32 %v1817, %v1863
    %v1865 = vsub.f32 1.0, %v1864
    %v1866 = vmul.f32 %v1863, %v1865
    %v1867 = vadd.f32 %v1863, %v1866
    %vm1868 = vweird.f32 %v1817
    %vm1869 = vweird.f32 %v1863
    %vm1870 = vmor %vm1868, %vm1869
    %v1871 = vsel %vm1870, %v1863, %v1867
    %v1872 = vand.u32 2147483647, %v1817
    %vm1873 = vcmp.eq.f32.partialorder %v1872, 8.507059e+37
    %v1874 = vand.u32 %v1817, 2147483648
    %v1875 = vor.u32 1.1754944e-38, %v1874
    %v1876 = vsel %vm1873, %v1875, %v1871
    %v1877 = vmul.f32 1.0, %v1876
    %v1878 = vperm.slane %v1832, 0
    %v1879 = vperm.slane %v1847, 0
    %v1880 = vperm.slane %v1862, 0
    %v1881 = vperm.slane %v1877, 0
    %1883 = vst [vmem:[#allocation1] ss:$4 sm:$0xff] %v1722
    %v1884 = vld.sshfl [vmem:[#allocation1] sm:$0xff pattern:$0x73625140]
    %v1885 = vld.sshfl [vmem:[#allocation1 + $0x8] sm:$0xff pattern:$0x73625140]
    %v1886 = vld.sshfl [vmem:[#allocation1 + $0x10] sm:$0xff pattern:$0x73625140]
    %v1887 = vld.sshfl [vmem:[#allocation1 + $0x18] sm:$0xff pattern:$0x73625140]
    %vm1888 = vcmask 15360
    %v1890 = vsel %vm1888, %v1721, 0
    %v1892 = vsel %vm432, %v1884, 0
    %v1894 = vsel %vm432, %v1885, 0
    %v1896 = vsel %vm432, %v1886, 0
    %v1898 = vsel %vm432, %v1887, 0
    %1900 = vmatpush.msra.mxu0 0.0
    %1901 = vmatpush.msra.mxu0 0.0
    %1902 = vmatpush.msra.mxu0 0.0
    %1903 = vmatpush.msra.mxu0 0.0
    %1904 = vmatpush.msra.mxu0 0.0
    %1905 = vmatpush.msra.mxu0 0.0
    %1906 = vmatpush.msra.mxu0 0.0
    %1907 = vmatpush.msra.mxu0 0.0
    %1908 = vmatpush.msra.mxu0 0.0
    %1909 = vmatpush.msra.mxu0 0.0
    %1910 = vmatpush.msra.mxu0 0.0
    %1911 = vmatpush.msra.mxu0 0.0
    %1912 = vmatpush.msra.mxu0 0.0
    %1913 = vmatpush.msra.mxu0 0.0
    %1914 = vmatpush.msra.mxu0 0.0
    %1915 = vmatpush.msra.mxu0 %v1892
    %1916 = vmatmul.f32.gmra.mxu0 %v1890
    %v1917 = vpop.f32.mrf.mxu0
    %v1918 = vadd.f32 %v1878, %v1917
    %1919 = vdwg.mxu0
    %1920 = vmatpush.msra.mxu0 0.0
    %1921 = vmatpush.msra.mxu0 0.0
    %1922 = vmatpush.msra.mxu0 0.0
    %1923 = vmatpush.msra.mxu0 0.0
    %1924 = vmatpush.msra.mxu0 0.0
    %1925 = vmatpush.msra.mxu0 0.0
    %1926 = vmatpush.msra.mxu0 0.0
    %1927 = vmatpush.msra.mxu0 0.0
    %1928 = vmatpush.msra.mxu0 0.0
    %1929 = vmatpush.msra.mxu0 0.0
    %1930 = vmatpush.msra.mxu0 0.0
    %1931 = vmatpush.msra.mxu0 0.0
    %1932 = vmatpush.msra.mxu0 0.0
    %1933 = vmatpush.msra.mxu0 0.0
    %1934 = vmatpush.msra.mxu0 0.0
    %1935 = vmatpush.msra.mxu0 %v1894
    %1936 = vmatmul.f32.gmra.mxu0 %v1890
    %v1937 = vpop.f32.mrf.mxu0
    %v1938 = vadd.f32 %v1879, %v1937
    %1939 = vdwg.mxu0
    %1940 = vmatpush.msra.mxu0 0.0
    %1941 = vmatpush.msra.mxu0 0.0
    %1942 = vmatpush.msra.mxu0 0.0
    %1943 = vmatpush.msra.mxu0 0.0
    %1944 = vmatpush.msra.mxu0 0.0
    %1945 = vmatpush.msra.mxu0 0.0
    %1946 = vmatpush.msra.mxu0 0.0
    %1947 = vmatpush.msra.mxu0 0.0
    %1948 = vmatpush.msra.mxu0 0.0
    %1949 = vmatpush.msra.mxu0 0.0
    %1950 = vmatpush.msra.mxu0 0.0
    %1951 = vmatpush.msra.mxu0 0.0
    %1952 = vmatpush.msra.mxu0 0.0
    %1953 = vmatpush.msra.mxu0 0.0
    %1954 = vmatpush.msra.mxu0 0.0
    %1955 = vmatpush.msra.mxu0 %v1896
    %1956 = vmatmul.f32.gmra.mxu0 %v1890
    %v1957 = vpop.f32.mrf.mxu0
    %v1958 = vadd.f32 %v1880, %v1957
    %1959 = vdwg.mxu0
    %1960 = vmatpush.msra.mxu0 0.0
    %1961 = vmatpush.msra.mxu0 0.0
    %1962 = vmatpush.msra.mxu0 0.0
    %1963 = vmatpush.msra.mxu0 0.0
    %1964 = vmatpush.msra.mxu0 0.0
    %1965 = vmatpush.msra.mxu0 0.0
    %1966 = vmatpush.msra.mxu0 0.0
    %1967 = vmatpush.msra.mxu0 0.0
    %1968 = vmatpush.msra.mxu0 0.0
    %1969 = vmatpush.msra.mxu0 0.0
    %1970 = vmatpush.msra.mxu0 0.0
    %1971 = vmatpush.msra.mxu0 0.0
    %1972 = vmatpush.msra.mxu0 0.0
    %1973 = vmatpush.msra.mxu0 0.0
    %1974 = vmatpush.msra.mxu0 0.0
    %1975 = vmatpush.msra.mxu0 %v1898
    %1976 = vmatmul.f32.gmra.mxu0 %v1890
    %v1977 = vpop.f32.mrf.mxu0
    %v1978 = vadd.f32 %v1881, %v1977
    %1979 = vdwg.mxu0
    %v1980 = vmul.f32 %v1489, %v1918
    %v1981 = vmul.f32 %v1490, %v1938
    %v1982 = vmul.f32 %v1491, %v1958
    %v1983 = vmul.f32 %v1492, %v1978
    %1984 = vst [vmem:[#allocation3] sm:$0xff] %v1980
    %1985 = vst [vmem:[#allocation3 + $0x8] sm:$0xff] %v1981
    %1986 = vst [vmem:[#allocation3 + $0x10] sm:$0xff] %v1982
    %1987 = vst [vmem:[#allocation3 + $0x18] sm:$0xff] %v1983
    // Predicated region
    $region90: #{tpu_custom_call.1} parent=1 // pred_check
      _
    $region91: #{tpu_custom_call.1} parent=1 // pred_check_branch
      %1989 = sbr.rel (0) target = $region93
    $region92: #{tpu_custom_call.1} parent=1 // pred_region
      %1991 = vsyncadd [#allocation4], 0
      %s1993 = sshll.u32 [#allocation3], 4
      %s1994 = int_to_ptr.vmem [resolvable:$true] %s1993
      %s1995 = sshll.u32 %s22, 4
      %s1996 = int_to_ptr.hbm [resolvable:$true] %s1995
      %1998 = dma.vmem_to_hbm [thread:$0]  %s1994, 512, %s1996, [#allocation4]
    $region93: #{tpu_custom_call.1} parent=1 // pred_fallthru
      _
    // Predicated region
    $region94: #{tpu_custom_call.1} parent=1 // pred_check
      _
    $region95: #{tpu_custom_call.1} parent=1 // pred_check_branch
      %2000 = sbr.rel (0) target = $region97
    $region96: #{tpu_custom_call.1} parent=1 // pred_region
      %2002 = dma.done [#allocation4], 512
    $region97: #{tpu_custom_call.1} parent=1 // pred_fallthru
      _
    %2003 = vsyncpa [#allocation4], 1

</llo_original>
